<compile_context>
chip_gen: v6e
topology: v6e:2x2x1
jax: 0.10.0
libtpu: 0.0.40
codegen_flags: <defaults>
</compile_context>

<pallas_src>
import jax
import jax.numpy as jnp
from jax import lax
from jax.experimental import pallas as pl
from jax.experimental.pallas import tpu as pltpu


def _round_up(x, m):
    return (x + m - 1) // m * m


# ----------------------------------------------------------------------------- kernel
def _embedding_block_kernel(x_ref, wh_ref, bh_ref, wl_ref, bl_ref,
                            pred_ref, normed_ref):
    # x_ref:      (bb, feat)      f32 (cast to compute dtype in-kernel)
    # wh_ref:     (feat, emb_p)   fc_hidden.weight, pre-transposed + padded (bf16)
    # bh_ref:     (1, emb_p)      f32
    # wl_ref:     (emb_p, ncls_p) fc_logits.weight, pre-transposed + padded (bf16)
    # bl_ref:     (1, ncls_p)     f32
    # pred_ref:   (bb, ncls_p)    f32
    # normed_ref: (bb, emb_p)     f32

    # In-kernel cast (VPU, hidden under DMA/MXU) -> no separate HBM cast pass outside.
    x = x_ref[...].astype(wh_ref.dtype)

    # fc_hidden on the MXU, f32 accumulate.
    emb = jnp.dot(x, wh_ref[...], preferred_element_type=jnp.float32) + bh_ref[...]

    # F.normalize(p=2, dim=1, eps=1e-12): emb * rsqrt(max(||emb||^2, 1e-24)).
    # Padded emb columns are exactly 0 (zero weight cols / zero bias) -> norm unaffected.
    # Per-row math only: garbage rows of a partial last batch block are safe and their
    # stores are masked by Pallas.
    nsq = jnp.sum(emb * emb, axis=1, keepdims=True)
    normed_ref[...] = (emb * lax.rsqrt(jnp.maximum(nsq, 1e-24))).astype(normed_ref.dtype)

    # fc_logits(relu(embedding)); padded pred columns are exactly 0, sliced off outside.
    relu_emb = jnp.maximum(emb, 0.0).astype(wl_ref.dtype)
    pred_ref[...] = (
        jnp.dot(relu_emb, wl_ref[...], preferred_element_type=jnp.float32) + bl_ref[...]
    ).astype(pred_ref.dtype)


# ------------------------------------------------------------------- init-time params
def prepare_embedding_block_params(wh, bh, wl, bl, compute_dtype=jnp.bfloat16):
    """One-time (model-init) preparation of PyTorch-layout Linear parameters.

    wh: [emb, feat] (fc_hidden.weight), bh: [emb]
    wl: [n_classes, emb] (fc_logits.weight), bl: [n_classes]
    """
    emb_size, feat_size = wh.shape
    n_classes = wl.shape[0]
    emb_p = _round_up(emb_size, 128)
    ncls_p = _round_up(n_classes, 128)

    wh_t = jnp.zeros((feat_size, emb_p), compute_dtype)
    wh_t = wh_t.at[:, :emb_size].set(wh.T.astype(compute_dtype))
    bh_p = jnp.zeros((1, emb_p), jnp.float32).at[0, :emb_size].set(bh.astype(jnp.float32))

    wl_t = jnp.zeros((emb_p, ncls_p), compute_dtype)
    wl_t = wl_t.at[:emb_size, :n_classes].set(wl.T.astype(compute_dtype))
    bl_p = jnp.zeros((1, ncls_p), jnp.float32).at[0, :n_classes].set(bl.astype(jnp.float32))

    return dict(wh_t=wh_t, bh=bh_p, wl_t=wl_t, bl=bl_p,
                feat_size=feat_size, emb_size=emb_size, n_classes=n_classes,
                compute_dtype=compute_dtype)


# ----------------------------------------------------------------------- tiling logic
def _block_vmem_bytes(bb, feat, emb_p, ncls_p, w_itemsize):
    act = 2 * bb * feat * 4                      # double-buffered f32 feature tile
    act += 2 * bb * (emb_p + ncls_p) * 4         # double-buffered f32 output tiles
    w = (feat * emb_p + emb_p * ncls_p) * w_itemsize + (emb_p + ncls_p) * 4
    return act + 2 * w                           # weights (double-buffered, worst case)


def _pick_block_b(B, feat, emb_p, ncls_p, w_itemsize, budget_bytes, num_cores):
    # Largest MXU-aligned batch tile that fits the VMEM budget. A single grid step is
    # optimal here (each step carries ~0.35us fixed overhead on a mem-bound kernel);
    # large B naturally gets multiple steps via the 2048-row cap / VMEM budget.
    bb = min(2048, _round_up(B, 8))
    while bb > 8 and _block_vmem_bytes(bb, feat, emb_p, ncls_p, w_itemsize) > budget_bytes:
        bb = max(8, _round_up(bb // 2, 8))
    # 2-TensorCore parts (megacore / v7x): even 2-way split of the 'parallel' batch axis
    # when the batch is big enough for two full MXU tiles. Never force more steps.
    if num_cores >= 2 and B >= 256:
        bb = min(bb, _round_up(pl.cdiv(B, 2), 8))
    return max(8, bb)


def _tpu_info():
    try:
        return pltpu.get_tpu_info()
    except Exception:
        return None


def _num_tensorcores(info):
    for attr in ("num_cores", "tensorcore_count", "num_tensorcores"):
        v = getattr(info, attr, None) if info is not None else None
        if v:
            try:
                return int(v)
            except Exception:
                pass
    try:
        return int(getattr(jax.devices()[0], "num_cores", 1) or 1)
    except Exception:
        return 1


# ---------------------------------------------------------------------------- forward
def embedding_block_forward(feature, params, *, block_b=None):
    """feature: [B, feat_size] f32.  Returns (pred [B, n_classes] f32,
    normed_embedding [B, emb_size] f32, feature pass-through)."""
    feat_size = params["feat_size"]
    emb_size = params["emb_size"]
    n_classes = params["n_classes"]
    wh_t, bh, wl_t, bl = params["wh_t"], params["bh"], params["wl_t"], params["bl"]
    emb_p, ncls_p = wh_t.shape[1], wl_t.shape[1]
    w_itemsize = jnp.dtype(wh_t.dtype).itemsize

    B, F = feature.shape
    assert F == feat_size

    # Generation-aware VMEM budget (v7x: 64 MiB per core; v5e/v6e: 128 MiB).
    info = _tpu_info()
    vmem_cap = int(getattr(info, "vmem_capacity_bytes", 0) or 0) if info is not None else 0
    if vmem_cap <= 0:
        vmem_cap = 64 << 20                      # conservative default (v7x per-core)
    vmem_limit = int(min(vmem_cap // 2, 64 << 20))
    budget = vmem_limit // 2                     # headroom for compiler temporaries

    if block_b is None:
        block_b = _pick_block_b(B, feat_size, emb_p, ncls_p, w_itemsize, budget,
                                _num_tensorcores(info))
    block_b = max(8, _round_up(block_b, 8))

    # Partial last block handled by Pallas masking; no wrapper-side batch padding.
    grid = (pl.cdiv(B, block_b),)

    out_shape = (
        jax.ShapeDtypeStruct((B, ncls_p), jnp.float32),   # pred   (lane-dense)
        jax.ShapeDtypeStruct((B, emb_p), jnp.float32),    # normed (lane-dense)
    )
    # TODO(synk): if consumers tolerate bf16 (or a fused (emb_p+ncls_p) output slab),
    # emitting narrower outputs would cut the dominant HBM write bytes ~2x.
    out_specs = (
        pl.BlockSpec((block_b, ncls_p), lambda i: (i, 0)),
        pl.BlockSpec((block_b, emb_p), lambda i: (i, 0)),
    )

    # TODO(synk): for very large feat_size (esp. on v7x's 64 MiB VMEM), add an inner
    # "arbitrary" K grid axis over feat with an f32 accumulator scratch (pl.when
    # init/finalize) instead of keeping the whole [feat, emb_p] weight resident.
    in_specs = [
        pl.BlockSpec((block_b, feat_size), lambda i: (i, 0)),   # f32 feature tile
        pl.BlockSpec((feat_size, emb_p), lambda i: (0, 0)),     # block-invariant weights
        pl.BlockSpec((1, emb_p), lambda i: (0, 0)),
        pl.BlockSpec((emb_p, ncls_p), lambda i: (0, 0)),
        pl.BlockSpec((1, ncls_p), lambda i: (0, 0)),
    ]

    cost = pl.CostEstimate(
        flops=2 * B * (feat_size * emb_p + emb_p * ncls_p),
        transcendentals=B,                                      # rsqrt per row
        bytes_accessed=(B * feat_size * 4
                        + (feat_size * emb_p + emb_p * ncls_p) * w_itemsize
                        + (emb_p + ncls_p) * 4
                        + B * (emb_p + ncls_p) * 4),
    )

    pred_p, normed_p = pl.pallas_call(
        _embedding_block_kernel,
        out_shape=out_shape,
        grid_spec=pltpu.PrefetchScalarGridSpec(
            num_scalar_prefetch=0,
            grid=grid,
            in_specs=in_specs,
            out_specs=out_specs,
        ),
        compiler_params=pltpu.CompilerParams(
            dimension_semantics=("parallel",),   # batch axis -> megacore where present
            vmem_limit_bytes=vmem_limit,
        ),
        cost_estimate=cost,
    )(feature, wh_t, bh, wl_t, bl)

    pred = pred_p[:, :n_classes]
    normed = normed_p[:, :emb_size]
    return pred, normed, feature


# --------------------------------------------------------------------------- reference
def _reference(feature, wh, bh, wl, bl, compute_dtype=jnp.float32):
    f = feature.astype(compute_dtype)
    emb = jnp.dot(f, wh.astype(compute_dtype).T,
                  preferred_element_type=jnp.float32) + bh
    nsq = jnp.sum(emb * emb, axis=1, keepdims=True)
    normed = emb * lax.rsqrt(jnp.maximum(nsq, 1e-24))
    relu = jnp.maximum(emb, 0.0).astype(compute_dtype)
    pred = jnp.dot(relu, wl.astype(compute_dtype).T,
                   preferred_element_type=jnp.float32) + bl
    return pred, normed, feature


if __name__ == "__main__":
    # Small shapes consistent with the module; B=512 gives a grid of 1 (single-core)
    # or 2x256 (2-TensorCore parts) batch blocks.
    B, feat_size, emb_size, n_classes = 512, 32, 64, 16

    key = jax.random.PRNGKey(0)
    k_x, k_wh, k_bh, k_wl, k_bl = jax.random.split(key, 5)

    feature = jax.random.normal(k_x, (B, feat_size), dtype=jnp.float32)

    # Deterministic parameter init (PyTorch Linear-style uniform bounds).
    bound_h = 1.0 / (feat_size ** 0.5)
    wh = jax.random.uniform(k_wh, (emb_size, feat_size), jnp.float32, -bound_h, bound_h)
    bh = jax.random.uniform(k_bh, (emb_size,), jnp.float32, -bound_h, bound_h)
    bound_l = 1.0 / (emb_size ** 0.5)
    wl = jax.random.uniform(k_wl, (n_classes, emb_size), jnp.float32, -bound_l, bound_l)
    bl = jax.random.uniform(k_bl, (n_classes,), jnp.float32, -bound_l, bound_l)

    # Init-time prep (transpose + pad + bf16 cast) happens once, outside the forward.
    params = prepare_embedding_block_params(wh, bh, wl, bl, compute_dtype=jnp.bfloat16)

    pred, normed, feat_out = embedding_block_forward(feature, params)
    jax.block_until_ready((pred, normed))

    # Check against a reference using the same bf16 casts / f32 accumulation.
    pred_ref, normed_ref, _ = _reference(feature, wh, bh, wl, bl,
                                         compute_dtype=jnp.bfloat16)
    assert jnp.allclose(pred, pred_ref, atol=1e-4, rtol=1e-4)
    assert jnp.allclose(normed, normed_ref, atol=1e-4, rtol=1e-4)

    # Loose sanity check against the pure-f32 PyTorch semantics.
    pred_f32, normed_f32, _ = _reference(feature, wh, bh, wl, bl,
                                         compute_dtype=jnp.float32)
    assert jnp.allclose(pred, pred_f32, atol=5e-2, rtol=5e-2)
    assert jnp.allclose(normed, normed_f32, atol=5e-2, rtol=5e-2)

    assert feat_out is feature
    assert pred.shape == (B, n_classes) and normed.shape == (B, emb_size)

    print("KERNEL_OK")
</pallas_src>

<mosaic_0001>
module attributes {stable_mosaic.version = 11 : i64} {
  func.func @_embedding_block_kernel(%arg0: i32, %arg1: memref<512x32xf32, #tpu.memory_space<vmem>>, %arg2: memref<32x128xbf16, #tpu.memory_space<vmem>>, %arg3: memref<1x128xf32, #tpu.memory_space<vmem>>, %arg4: memref<128x128xbf16, #tpu.memory_space<vmem>>, %arg5: memref<1x128xf32, #tpu.memory_space<vmem>>, %arg6: memref<512x128xf32, #tpu.memory_space<vmem>>, %arg7: memref<512x128xf32, #tpu.memory_space<vmem>>) attributes {dimension_semantics = [#tpu.dimension_semantics<parallel>], iteration_bounds = array<i64: 1>, scalar_prefetch = 0 : i64, scratch_operands = 0 : i64, tpu.core_type = #tpu.core_type<tc>, window_params = [{transform_indices = @transform_0, window_bounds = array<i64: 512, 32>}, {pipeline_mode = #tpu.pipeline_mode<synchronous>, transform_indices = @transform_1, window_bounds = array<i64: 32, 128>}, {pipeline_mode = #tpu.pipeline_mode<synchronous>, transform_indices = @transform_2, window_bounds = array<i64: 1, 128>}, {pipeline_mode = #tpu.pipeline_mode<synchronous>, transform_indices = @transform_3, window_bounds = array<i64: 128, 128>}, {pipeline_mode = #tpu.pipeline_mode<synchronous>, transform_indices = @transform_4, window_bounds = array<i64: 1, 128>}, {transform_indices = @transform_5, window_bounds = array<i64: 512, 128>}, {transform_indices = @transform_6, window_bounds = array<i64: 512, 128>}]} {
    %c0 = arith.constant 0 : index
    %c0_0 = arith.constant 0 : index
    %0 = vector.load %arg1[%c0, %c0_0] : memref<512x32xf32, #tpu.memory_space<vmem>>, vector<512x32xf32>
    %1 = arith.truncf %0 : vector<512x32xf32> to vector<512x32xbf16>
    %c0_1 = arith.constant 0 : index
    %c0_2 = arith.constant 0 : index
    %2 = vector.load %arg2[%c0_1, %c0_2] : memref<32x128xbf16, #tpu.memory_space<vmem>>, vector<32x128xbf16>
    %cst = arith.constant dense<0.000000e+00> : vector<512x128xf32>
    %3 = tpu.matmul %1, %2, %cst {dimension_numbers = #tpu.dot_dimension_numbers<[1], [0], [0], [1], [0, 0, 1, 1], [], []>} : vector<512x32xbf16>, vector<32x128xbf16>, vector<512x128xf32> -> vector<512x128xf32>
    %c0_3 = arith.constant 0 : index
    %c0_4 = arith.constant 0 : index
    %4 = vector.load %arg3[%c0_3, %c0_4] : memref<1x128xf32, #tpu.memory_space<vmem>>, vector<1x128xf32>
    %5 = vector.broadcast %4 : vector<1x128xf32> to vector<512x128xf32>
    %6 = arith.addf %3, %5 : vector<512x128xf32>
    %7 = arith.mulf %6, %6 : vector<512x128xf32>
    %cst_5 = arith.constant dense<0.000000e+00> : vector<512xf32>
    %8 = vector.multi_reduction <add>, %7, %cst_5 [1] : vector<512x128xf32> to vector<512xf32>
    %9 = vector.shape_cast %8 : vector<512xf32> to vector<512x1xf32>
    %cst_6 = arith.constant 1.000000e-24 : f32
    %10 = vector.broadcast %cst_6 : f32 to vector<512x1xf32>
    %11 = arith.maximumf %9, %10 : vector<512x1xf32>
    %12 = math.rsqrt %11 : vector<512x1xf32>
    %13 = vector.broadcast %12 : vector<512x1xf32> to vector<512x128xf32>
    %14 = arith.mulf %6, %13 : vector<512x128xf32>
    %c0_7 = arith.constant 0 : index
    %c0_8 = arith.constant 0 : index
    %15 = vector.load %arg7[%c0_7, %c0_8] : memref<512x128xf32, #tpu.memory_space<vmem>>, vector<512x128xf32>
    tpu.vector_store %arg7[%c0_7, %c0_8], %14 {strides = array<i32>} : memref<512x128xf32, #tpu.memory_space<vmem>>, vector<512x128xf32>,
    %cst_9 = arith.constant 0.000000e+00 : f32
    %16 = vector.broadcast %cst_9 : f32 to vector<512x128xf32>
    %17 = arith.maximumf %6, %16 : vector<512x128xf32>
    %18 = arith.truncf %17 : vector<512x128xf32> to vector<512x128xbf16>
    %c0_10 = arith.constant 0 : index
    %c0_11 = arith.constant 0 : index
    %19 = vector.load %arg4[%c0_10, %c0_11] : memref<128x128xbf16, #tpu.memory_space<vmem>>, vector<128x128xbf16>
    %cst_12 = arith.constant dense<0.000000e+00> : vector<512x128xf32>
    %20 = tpu.matmul %18, %19, %cst_12 {dimension_numbers = #tpu.dot_dimension_numbers<[1], [0], [0], [1], [0, 0, 1, 1], [], []>} : vector<512x128xbf16>, vector<128x128xbf16>, vector<512x128xf32> -> vector<512x128xf32>
    %c0_13 = arith.constant 0 : index
    %c0_14 = arith.constant 0 : index
    %21 = vector.load %arg5[%c0_13, %c0_14] : memref<1x128xf32, #tpu.memory_space<vmem>>, vector<1x128xf32>
    %22 = vector.broadcast %21 : vector<1x128xf32> to vector<512x128xf32>
    %23 = arith.addf %20, %22 : vector<512x128xf32>
    %c0_15 = arith.constant 0 : index
    %c0_16 = arith.constant 0 : index
    %24 = vector.load %arg6[%c0_15, %c0_16] : memref<512x128xf32, #tpu.memory_space<vmem>>, vector<512x128xf32>
    tpu.vector_store %arg6[%c0_15, %c0_16], %23 {strides = array<i32>} : memref<512x128xf32, #tpu.memory_space<vmem>>, vector<512x128xf32>,
    return
  }
  func.func @transform_0(%arg0: i32) -> (i32, i32) {
    %c0_i32 = arith.constant 0 : i32
    %c0_i32_0 = arith.constant 0 : i32
    return %arg0, %c0_i32 : i32, i32
  }
  func.func @transform_1(%arg0: i32) -> (i32, i32) {
    %c0_i32 = arith.constant 0 : i32
    %c0_i32_0 = arith.constant 0 : i32
    %c0_i32_1 = arith.constant 0 : i32
    return %c0_i32, %c0_i32_0 : i32, i32
  }
  func.func @transform_2(%arg0: i32) -> (i32, i32) {
    %c0_i32 = arith.constant 0 : i32
    %c0_i32_0 = arith.constant 0 : i32
    %c0_i32_1 = arith.constant 0 : i32
    return %c0_i32, %c0_i32_0 : i32, i32
  }
  func.func @transform_3(%arg0: i32) -> (i32, i32) {
    %c0_i32 = arith.constant 0 : i32
    %c0_i32_0 = arith.constant 0 : i32
    %c0_i32_1 = arith.constant 0 : i32
    return %c0_i32, %c0_i32_0 : i32, i32
  }
  func.func @transform_4(%arg0: i32) -> (i32, i32) {
    %c0_i32 = arith.constant 0 : i32
    %c0_i32_0 = arith.constant 0 : i32
    %c0_i32_1 = arith.constant 0 : i32
    return %c0_i32, %c0_i32_0 : i32, i32
  }
  func.func @transform_5(%arg0: i32) -> (i32, i32) {
    %c0_i32 = arith.constant 0 : i32
    %c0_i32_0 = arith.constant 0 : i32
    return %arg0, %c0_i32 : i32, i32
  }
  func.func @transform_6(%arg0: i32) -> (i32, i32) {
    %c0_i32 = arith.constant 0 : i32
    %c0_i32_0 = arith.constant 0 : i32
    return %arg0, %c0_i32 : i32, i32
  }
}

</mosaic_0001>

<llo_original>
// kernel: tpu_custom_call.1
$region0: #{tpu_custom_call.1}
  #allocation0 [shape = 'u32[]', space=smem, size = 0x4, offset = 0x4, fixed_abs, tag = 'smem constant byte address 0x4 - core index']
  #allocation1 [shape = 'u32[144,128]{1,0:T(1,128)}', space=vmem, size = 0x12000, scoped, tag = 'internal scratch']
  %s0 = inlined_call_operand.vmem [shape: f32[512,32], index: 0, kind: input, shape index: {}]
  %s1 = inlined_call_operand.vmem [shape: bf16[32,128], index: 1, kind: input, shape index: {}]
  %s2 = inlined_call_operand.vmem [shape: f32[1,128], index: 2, kind: input, shape index: {}]
  %s3 = inlined_call_operand.vmem [shape: bf16[128,128], index: 3, kind: input, shape index: {}]
  %s4 = inlined_call_operand.vmem [shape: f32[1,128], index: 4, kind: input, shape index: {}]
  %s5 = inlined_call_operand.hbm [shape: f32[512,128], index: 5, kind: output, shape index: {0}]
  %s6 = inlined_call_operand.hbm [shape: f32[512,128], index: 6, kind: output, shape index: {1}]
  %7 = xla_tuple %s5, %s6
  %s8 = sld [smem:[#allocation0]]
  $region38: #{tpu_custom_call.1} parent=0
    _
  %s10 = ssub.s32 1, %s8
  %s11 = scalar_select 0, %s10, %s8
  $region1: #{tpu_custom_call.1} parent=0
    #allocation2 [shape = 'u8[262144]{0}', space=vmem, size = 0x40000, scoped, tag = 'output window, operand 0, single buffered']
    #allocation3 [shape = 's32[1]{0}', space=sflag, size = 0x4, scoped, tag = 'scoped memory for tpu_custom_call.1']
    #allocation4 [shape = 'u8[262144]{0}', space=vmem, size = 0x40000, scoped, tag = 'output window, operand 1, single buffered']
    #allocation5 [shape = 's32[1]{0}', space=sflag, size = 0x4, scoped, tag = 'scoped memory for tpu_custom_call.1']
    %12 = vsyncpa [#allocation3], 0
    %13 = vsyncpa [#allocation5], 0
    // Predicated region
    $region2: #{tpu_custom_call.1} parent=1 // pred_check
      _
    $region3: #{tpu_custom_call.1} parent=1 // pred_check_branch
      %15 = sbr.rel (0) target = $region5
    $region4: #{tpu_custom_call.1} parent=1 // pred_region
      _
    $region5: #{tpu_custom_call.1} parent=1 // pred_fallthru
      _
    // Predicated region
    $region6: #{tpu_custom_call.1} parent=1 // pred_check
      _
    $region7: #{tpu_custom_call.1} parent=1 // pred_check_branch
      %17 = sbr.rel (0) target = $region9
    $region8: #{tpu_custom_call.1} parent=1 // pred_region
      _
    $region9: #{tpu_custom_call.1} parent=1 // pred_fallthru
      _
    // Predicated region
    $region10: #{tpu_custom_call.1} parent=1 // pred_check
      _
    $region11: #{tpu_custom_call.1} parent=1 // pred_check_branch
      %19 = sbr.rel (0) target = $region13
    $region12: #{tpu_custom_call.1} parent=1 // pred_region
      _
    $region13: #{tpu_custom_call.1} parent=1 // pred_fallthru
      _
    // Predicated region
    $region14: #{tpu_custom_call.1} parent=1 // pred_check
      _
    $region15: #{tpu_custom_call.1} parent=1 // pred_check_branch
      %21 = sbr.rel (0) target = $region17
    $region16: #{tpu_custom_call.1} parent=1 // pred_region
      _
    $region17: #{tpu_custom_call.1} parent=1 // pred_fallthru
      _
    // Predicated region
    $region18: #{tpu_custom_call.1} parent=1 // pred_check
      _
    $region19: #{tpu_custom_call.1} parent=1 // pred_check_branch
      %23 = sbr.rel (0) target = $region21
    $region20: #{tpu_custom_call.1} parent=1 // pred_region
      _
    $region21: #{tpu_custom_call.1} parent=1 // pred_fallthru
      _
    %v25 = vld [vmem:[%s0] sm:$0xff]
    %v26 = vld [vmem:[%s0 + $0x8] sm:$0xff]
    %v27 = vld [vmem:[%s0 + $0x10] sm:$0xff]
    %v28 = vld [vmem:[%s0 + $0x18] sm:$0xff]
    %v29 = vld [vmem:[%s0 + $0x20] sm:$0xff]
    %v30 = vld [vmem:[%s0 + $0x28] sm:$0xff]
    %v31 = vld [vmem:[%s0 + $0x30] sm:$0xff]
    %v32 = vld [vmem:[%s0 + $0x38] sm:$0xff]
    %v33 = vld [vmem:[%s0 + $0x40] sm:$0xff]
    %v34 = vld [vmem:[%s0 + $0x48] sm:$0xff]
    %v35 = vld [vmem:[%s0 + $0x50] sm:$0xff]
    %v36 = vld [vmem:[%s0 + $0x58] sm:$0xff]
    %v37 = vld [vmem:[%s0 + $0x60] sm:$0xff]
    %v38 = vld [vmem:[%s0 + $0x68] sm:$0xff]
    %v39 = vld [vmem:[%s0 + $0x70] sm:$0xff]
    %v40 = vld [vmem:[%s0 + $0x78] sm:$0xff]
    %v41 = vld [vmem:[%s0 + $0x80] sm:$0xff]
    %v42 = vld [vmem:[%s0 + $0x88] sm:$0xff]
    %v43 = vld [vmem:[%s0 + $0x90] sm:$0xff]
    %v44 = vld [vmem:[%s0 + $0x98] sm:$0xff]
    %v45 = vld [vmem:[%s0 + $0xa0] sm:$0xff]
    %v46 = vld [vmem:[%s0 + $0xa8] sm:$0xff]
    %v47 = vld [vmem:[%s0 + $0xb0] sm:$0xff]
    %v48 = vld [vmem:[%s0 + $0xb8] sm:$0xff]
    %v49 = vld [vmem:[%s0 + $0xc0] sm:$0xff]
    %v50 = vld [vmem:[%s0 + $0xc8] sm:$0xff]
    %v51 = vld [vmem:[%s0 + $0xd0] sm:$0xff]
    %v52 = vld [vmem:[%s0 + $0xd8] sm:$0xff]
    %v53 = vld [vmem:[%s0 + $0xe0] sm:$0xff]
    %v54 = vld [vmem:[%s0 + $0xe8] sm:$0xff]
    %v55 = vld [vmem:[%s0 + $0xf0] sm:$0xff]
    %v56 = vld [vmem:[%s0 + $0xf8] sm:$0xff]
    %v57 = vld [vmem:[%s0 + $0x100] sm:$0xff]
    %v58 = vld [vmem:[%s0 + $0x108] sm:$0xff]
    %v59 = vld [vmem:[%s0 + $0x110] sm:$0xff]
    %v60 = vld [vmem:[%s0 + $0x118] sm:$0xff]
    %v61 = vld [vmem:[%s0 + $0x120] sm:$0xff]
    %v62 = vld [vmem:[%s0 + $0x128] sm:$0xff]
    %v63 = vld [vmem:[%s0 + $0x130] sm:$0xff]
    %v64 = vld [vmem:[%s0 + $0x138] sm:$0xff]
    %v65 = vld [vmem:[%s0 + $0x140] sm:$0xff]
    %v66 = vld [vmem:[%s0 + $0x148] sm:$0xff]
    %v67 = vld [vmem:[%s0 + $0x150] sm:$0xff]
    %v68 = vld [vmem:[%s0 + $0x158] sm:$0xff]
    %v69 = vld [vmem:[%s0 + $0x160] sm:$0xff]
    %v70 = vld [vmem:[%s0 + $0x168] sm:$0xff]
    %v71 = vld [vmem:[%s0 + $0x170] sm:$0xff]
    %v72 = vld [vmem:[%s0 + $0x178] sm:$0xff]
    %v73 = vld [vmem:[%s0 + $0x180] sm:$0xff]
    %v74 = vld [vmem:[%s0 + $0x188] sm:$0xff]
    %v75 = vld [vmem:[%s0 + $0x190] sm:$0xff]
    %v76 = vld [vmem:[%s0 + $0x198] sm:$0xff]
    %v77 = vld [vmem:[%s0 + $0x1a0] sm:$0xff]
    %v78 = vld [vmem:[%s0 + $0x1a8] sm:$0xff]
    %v79 = vld [vmem:[%s0 + $0x1b0] sm:$0xff]
    %v80 = vld [vmem:[%s0 + $0x1b8] sm:$0xff]
    %v81 = vld [vmem:[%s0 + $0x1c0] sm:$0xff]
    %v82 = vld [vmem:[%s0 + $0x1c8] sm:$0xff]
    %v83 = vld [vmem:[%s0 + $0x1d0] sm:$0xff]
    %v84 = vld [vmem:[%s0 + $0x1d8] sm:$0xff]
    %v85 = vld [vmem:[%s0 + $0x1e0] sm:$0xff]
    %v86 = vld [vmem:[%s0 + $0x1e8] sm:$0xff]
    %v87 = vld [vmem:[%s0 + $0x1f0] sm:$0xff]
    %v88 = vld [vmem:[%s0 + $0x1f8] sm:$0xff]
    %v89 = vpack.c.bf16 %v26, %v25
    %v90 = vpack.c.bf16 %v28, %v27
    %v91 = vpack.c.bf16 %v30, %v29
    %v92 = vpack.c.bf16 %v32, %v31
    %v93 = vpack.c.bf16 %v34, %v33
    %v94 = vpack.c.bf16 %v36, %v35
    %v95 = vpack.c.bf16 %v38, %v37
    %v96 = vpack.c.bf16 %v40, %v39
    %v97 = vpack.c.bf16 %v42, %v41
    %v98 = vpack.c.bf16 %v44, %v43
    %v99 = vpack.c.bf16 %v46, %v45
    %v100 = vpack.c.bf16 %v48, %v47
    %v101 = vpack.c.bf16 %v50, %v49
    %v102 = vpack.c.bf16 %v52, %v51
    %v103 = vpack.c.bf16 %v54, %v53
    %v104 = vpack.c.bf16 %v56, %v55
    %v105 = vpack.c.bf16 %v58, %v57
    %v106 = vpack.c.bf16 %v60, %v59
    %v107 = vpack.c.bf16 %v62, %v61
    %v108 = vpack.c.bf16 %v64, %v63
    %v109 = vpack.c.bf16 %v66, %v65
    %v110 = vpack.c.bf16 %v68, %v67
    %v111 = vpack.c.bf16 %v70, %v69
    %v112 = vpack.c.bf16 %v72, %v71
    %v113 = vpack.c.bf16 %v74, %v73
    %v114 = vpack.c.bf16 %v76, %v75
    %v115 = vpack.c.bf16 %v78, %v77
    %v116 = vpack.c.bf16 %v80, %v79
    %v117 = vpack.c.bf16 %v82, %v81
    %v118 = vpack.c.bf16 %v84, %v83
    %v119 = vpack.c.bf16 %v86, %v85
    %v120 = vpack.c.bf16 %v88, %v87
    %v121 = vld [vmem:[%s1] sm:$0xf]
    %v122 = vld [vmem:[%s1 + $0x4] sm:$0xf]
    %v123 = vld [vmem:[%s1 + $0x8] sm:$0xf]
    %v124 = vld [vmem:[%s1 + $0xc] sm:$0xf]
    %v125 = vld [vmem:[%s2] sm:$0x1]
    %v127 = vlaneseq
    %v128 = vshrl.u32 %v127, 7
    %v129 = vsub.s32 0, %v128
    %v130 = vrot.slane %v125, %v129
    %v136 = vunpack.c.l.b16 %v121
    %v137 = vunpack.c.l.b16 %v122
    %v138 = vunpack.c.l.b16 %v123
    %v139 = vunpack.c.l.b16 %v124
    %v140 = vpack.c.b16 %v137, %v136
    %v141 = vpack.c.b16 %v139, %v138
    %vm144 = vcmask 261120
    %v146 = vsel %vm144, %v89, 0
    %v149 = vsel %vm144, %v90, 0
    %v152 = vsel %vm144, %v91, 0
    %v155 = vsel %vm144, %v92, 0
    %v158 = vsel %vm144, %v93, 0
    %v161 = vsel %vm144, %v94, 0
    %v164 = vsel %vm144, %v95, 0
    %v167 = vsel %vm144, %v96, 0
    %v170 = vsel %vm144, %v97, 0
    %v173 = vsel %vm144, %v98, 0
    %v176 = vsel %vm144, %v99, 0
    %v179 = vsel %vm144, %v100, 0
    %v182 = vsel %vm144, %v101, 0
    %v185 = vsel %vm144, %v102, 0
    %v188 = vsel %vm144, %v103, 0
    %v191 = vsel %vm144, %v104, 0
    %v194 = vsel %vm144, %v105, 0
    %v197 = vsel %vm144, %v106, 0
    %v200 = vsel %vm144, %v107, 0
    %v203 = vsel %vm144, %v108, 0
    %v206 = vsel %vm144, %v109, 0
    %v209 = vsel %vm144, %v110, 0
    %v212 = vsel %vm144, %v111, 0
    %v215 = vsel %vm144, %v112, 0
    %v218 = vsel %vm144, %v113, 0
    %v221 = vsel %vm144, %v114, 0
    %v224 = vsel %vm144, %v115, 0
    %v227 = vsel %vm144, %v116, 0
    %v230 = vsel %vm144, %v117, 0
    %v233 = vsel %vm144, %v118, 0
    %v236 = vsel %vm144, %v119, 0
    %v239 = vsel %vm144, %v120, 0
    %241 = vmatprep.subr.bf16.mxu0 0
    %242 = vmatpush1.bf16.msra.mxu0 0
    %243 = vmatprep.subr.bf16.mxu0 0
    %244 = vmatpush1.bf16.msra.mxu0 0
    %245 = vmatprep.subr.bf16.mxu0 0
    %246 = vmatpush1.bf16.msra.mxu0 0
    %247 = vmatprep.subr.bf16.mxu0 0
    %248 = vmatpush1.bf16.msra.mxu0 0
    %249 = vmatprep.subr.bf16.mxu0 0
    %250 = vmatpush1.bf16.msra.mxu0 0
    %251 = vmatprep.subr.bf16.mxu0 0
    %252 = vmatpush1.bf16.msra.mxu0 0
    %253 = vmatprep.subr.bf16.mxu0 0
    %254 = vmatpush1.bf16.msra.mxu0 %v141
    %255 = vmatprep.subr.bf16.mxu0 0
    %256 = vmatpush1.bf16.msra.mxu0 %v140
    %257 = vmatprep.subr.bf16.mxu0 0
    %258 = vmatpush2.bf16.msra.mxu0 0
    %259 = vmatprep.subr.bf16.mxu0 0
    %260 = vmatpush2.bf16.msra.mxu0 0
    %261 = vmatprep.subr.bf16.mxu0 0
    %262 = vmatpush2.bf16.msra.mxu0 0
    %263 = vmatprep.subr.bf16.mxu0 0
    %264 = vmatpush2.bf16.msra.mxu0 0
    %265 = vmatprep.subr.bf16.mxu0 0
    %266 = vmatpush2.bf16.msra.mxu0 0
    %267 = vmatprep.subr.bf16.mxu0 0
    %268 = vmatpush2.bf16.msra.mxu0 0
    %269 = vmatprep.subr.bf16.mxu0 0
    %270 = vmatpush2.bf16.msra.mxu0 0
    %271 = vmatprep.subr.bf16.mxu0 0
    %272 = vmatpush2.bf16.msra.mxu0 0
    %273 = vmatprep.mubr.bf16.mxu0 0
    %274 = vmatmul.mubr.bf16.gmra.mxu0 %v146
    %v275 = vpop.f32.mrf.mxu0
    %v276 = vadd.f32 %v130, %v275
    %v277 = vpop.f32.mrf.mxu0
    %v278 = vpop.f32.mrf.mxu0
    %v279 = vadd.f32 %v130, %v278
    %v280 = vpop.f32.mrf.mxu0
    %281 = vmatprep.mubr.bf16.mxu0 0
    %282 = vmatmul.mubr.bf16.gmra.mxu0 %v149
    %v283 = vpop.f32.mrf.mxu0
    %v284 = vadd.f32 %v130, %v283
    %v285 = vpop.f32.mrf.mxu0
    %v286 = vpop.f32.mrf.mxu0
    %v287 = vadd.f32 %v130, %v286
    %v288 = vpop.f32.mrf.mxu0
    %289 = vmatprep.mubr.bf16.mxu0 0
    %290 = vmatmul.mubr.bf16.gmra.mxu0 %v152
    %v291 = vpop.f32.mrf.mxu0
    %v292 = vadd.f32 %v130, %v291
    %v293 = vpop.f32.mrf.mxu0
    %v294 = vpop.f32.mrf.mxu0
    %v295 = vadd.f32 %v130, %v294
    %v296 = vpop.f32.mrf.mxu0
    %297 = vmatprep.mubr.bf16.mxu0 0
    %298 = vmatmul.mubr.bf16.gmra.mxu0 %v155
    %v299 = vpop.f32.mrf.mxu0
    %v300 = vadd.f32 %v130, %v299
    %v301 = vpop.f32.mrf.mxu0
    %v302 = vpop.f32.mrf.mxu0
    %v303 = vadd.f32 %v130, %v302
    %v304 = vpop.f32.mrf.mxu0
    %305 = vmatprep.mubr.bf16.mxu0 0
    %306 = vmatmul.mubr.bf16.gmra.mxu0 %v158
    %v307 = vpop.f32.mrf.mxu0
    %v308 = vadd.f32 %v130, %v307
    %v309 = vpop.f32.mrf.mxu0
    %v310 = vpop.f32.mrf.mxu0
    %v311 = vadd.f32 %v130, %v310
    %v312 = vpop.f32.mrf.mxu0
    %313 = vmatprep.mubr.bf16.mxu0 0
    %314 = vmatmul.mubr.bf16.gmra.mxu0 %v161
    %v315 = vpop.f32.mrf.mxu0
    %v316 = vadd.f32 %v130, %v315
    %v317 = vpop.f32.mrf.mxu0
    %v318 = vpop.f32.mrf.mxu0
    %v319 = vadd.f32 %v130, %v318
    %v320 = vpop.f32.mrf.mxu0
    %321 = vmatprep.mubr.bf16.mxu0 0
    %322 = vmatmul.mubr.bf16.gmra.mxu0 %v164
    %v323 = vpop.f32.mrf.mxu0
    %v324 = vadd.f32 %v130, %v323
    %v325 = vpop.f32.mrf.mxu0
    %v326 = vpop.f32.mrf.mxu0
    %v327 = vadd.f32 %v130, %v326
    %v328 = vpop.f32.mrf.mxu0
    %329 = vmatprep.mubr.bf16.mxu0 0
    %330 = vmatmul.mubr.bf16.gmra.mxu0 %v167
    %v331 = vpop.f32.mrf.mxu0
    %v332 = vadd.f32 %v130, %v331
    %v333 = vpop.f32.mrf.mxu0
    %v334 = vpop.f32.mrf.mxu0
    %v335 = vadd.f32 %v130, %v334
    %v336 = vpop.f32.mrf.mxu0
    %337 = vmatprep.mubr.bf16.mxu0 0
    %338 = vmatmul.mubr.bf16.gmra.mxu0 %v170
    %v339 = vpop.f32.mrf.mxu0
    %v340 = vadd.f32 %v130, %v339
    %v341 = vpop.f32.mrf.mxu0
    %v342 = vpop.f32.mrf.mxu0
    %v343 = vadd.f32 %v130, %v342
    %v344 = vpop.f32.mrf.mxu0
    %345 = vmatprep.mubr.bf16.mxu0 0
    %346 = vmatmul.mubr.bf16.gmra.mxu0 %v173
    %v347 = vpop.f32.mrf.mxu0
    %v348 = vadd.f32 %v130, %v347
    %v349 = vpop.f32.mrf.mxu0
    %v350 = vpop.f32.mrf.mxu0
    %v351 = vadd.f32 %v130, %v350
    %v352 = vpop.f32.mrf.mxu0
    %353 = vmatprep.mubr.bf16.mxu0 0
    %354 = vmatmul.mubr.bf16.gmra.mxu0 %v176
    %v355 = vpop.f32.mrf.mxu0
    %v356 = vadd.f32 %v130, %v355
    %v357 = vpop.f32.mrf.mxu0
    %v358 = vpop.f32.mrf.mxu0
    %v359 = vadd.f32 %v130, %v358
    %v360 = vpop.f32.mrf.mxu0
    %361 = vmatprep.mubr.bf16.mxu0 0
    %362 = vmatmul.mubr.bf16.gmra.mxu0 %v179
    %v363 = vpop.f32.mrf.mxu0
    %v364 = vadd.f32 %v130, %v363
    %v365 = vpop.f32.mrf.mxu0
    %v366 = vpop.f32.mrf.mxu0
    %v367 = vadd.f32 %v130, %v366
    %v368 = vpop.f32.mrf.mxu0
    %369 = vmatprep.mubr.bf16.mxu0 0
    %370 = vmatmul.mubr.bf16.gmra.mxu0 %v182
    %v371 = vpop.f32.mrf.mxu0
    %v372 = vadd.f32 %v130, %v371
    %v373 = vpop.f32.mrf.mxu0
    %v374 = vpop.f32.mrf.mxu0
    %v375 = vadd.f32 %v130, %v374
    %v376 = vpop.f32.mrf.mxu0
    %377 = vmatprep.mubr.bf16.mxu0 0
    %378 = vmatmul.mubr.bf16.gmra.mxu0 %v185
    %v379 = vpop.f32.mrf.mxu0
    %v380 = vadd.f32 %v130, %v379
    %v381 = vpop.f32.mrf.mxu0
    %v382 = vpop.f32.mrf.mxu0
    %v383 = vadd.f32 %v130, %v382
    %v384 = vpop.f32.mrf.mxu0
    %385 = vmatprep.mubr.bf16.mxu0 0
    %386 = vmatmul.mubr.bf16.gmra.mxu0 %v188
    %v387 = vpop.f32.mrf.mxu0
    %v388 = vadd.f32 %v130, %v387
    %v389 = vpop.f32.mrf.mxu0
    %v390 = vpop.f32.mrf.mxu0
    %v391 = vadd.f32 %v130, %v390
    %v392 = vpop.f32.mrf.mxu0
    %393 = vmatprep.mubr.bf16.mxu0 0
    %394 = vmatmul.mubr.bf16.gmra.mxu0 %v191
    %v395 = vpop.f32.mrf.mxu0
    %v396 = vadd.f32 %v130, %v395
    %v397 = vpop.f32.mrf.mxu0
    %v398 = vpop.f32.mrf.mxu0
    %v399 = vadd.f32 %v130, %v398
    %v400 = vpop.f32.mrf.mxu0
    %401 = vmatprep.mubr.bf16.mxu0 0
    %402 = vmatmul.mubr.bf16.gmra.mxu0 %v194
    %v403 = vpop.f32.mrf.mxu0
    %v404 = vadd.f32 %v130, %v403
    %v405 = vpop.f32.mrf.mxu0
    %v406 = vpop.f32.mrf.mxu0
    %v407 = vadd.f32 %v130, %v406
    %v408 = vpop.f32.mrf.mxu0
    %409 = vmatprep.mubr.bf16.mxu0 0
    %410 = vmatmul.mubr.bf16.gmra.mxu0 %v197
    %v411 = vpop.f32.mrf.mxu0
    %v412 = vadd.f32 %v130, %v411
    %v413 = vpop.f32.mrf.mxu0
    %v414 = vpop.f32.mrf.mxu0
    %v415 = vadd.f32 %v130, %v414
    %v416 = vpop.f32.mrf.mxu0
    %417 = vmatprep.mubr.bf16.mxu0 0
    %418 = vmatmul.mubr.bf16.gmra.mxu0 %v200
    %v419 = vpop.f32.mrf.mxu0
    %v420 = vadd.f32 %v130, %v419
    %v421 = vpop.f32.mrf.mxu0
    %v422 = vpop.f32.mrf.mxu0
    %v423 = vadd.f32 %v130, %v422
    %v424 = vpop.f32.mrf.mxu0
    %425 = vmatprep.mubr.bf16.mxu0 0
    %426 = vmatmul.mubr.bf16.gmra.mxu0 %v203
    %v427 = vpop.f32.mrf.mxu0
    %v428 = vadd.f32 %v130, %v427
    %v429 = vpop.f32.mrf.mxu0
    %v430 = vpop.f32.mrf.mxu0
    %v431 = vadd.f32 %v130, %v430
    %v432 = vpop.f32.mrf.mxu0
    %433 = vmatprep.mubr.bf16.mxu0 0
    %434 = vmatmul.mubr.bf16.gmra.mxu0 %v206
    %v435 = vpop.f32.mrf.mxu0
    %v436 = vadd.f32 %v130, %v435
    %v437 = vpop.f32.mrf.mxu0
    %v438 = vpop.f32.mrf.mxu0
    %v439 = vadd.f32 %v130, %v438
    %v440 = vpop.f32.mrf.mxu0
    %441 = vmatprep.mubr.bf16.mxu0 0
    %442 = vmatmul.mubr.bf16.gmra.mxu0 %v209
    %v443 = vpop.f32.mrf.mxu0
    %v444 = vadd.f32 %v130, %v443
    %v445 = vpop.f32.mrf.mxu0
    %v446 = vpop.f32.mrf.mxu0
    %v447 = vadd.f32 %v130, %v446
    %v448 = vpop.f32.mrf.mxu0
    %449 = vmatprep.mubr.bf16.mxu0 0
    %450 = vmatmul.mubr.bf16.gmra.mxu0 %v212
    %v451 = vpop.f32.mrf.mxu0
    %v452 = vadd.f32 %v130, %v451
    %v453 = vpop.f32.mrf.mxu0
    %v454 = vpop.f32.mrf.mxu0
    %v455 = vadd.f32 %v130, %v454
    %v456 = vpop.f32.mrf.mxu0
    %457 = vmatprep.mubr.bf16.mxu0 0
    %458 = vmatmul.mubr.bf16.gmra.mxu0 %v215
    %v459 = vpop.f32.mrf.mxu0
    %v460 = vadd.f32 %v130, %v459
    %v461 = vpop.f32.mrf.mxu0
    %v462 = vpop.f32.mrf.mxu0
    %v463 = vadd.f32 %v130, %v462
    %v464 = vpop.f32.mrf.mxu0
    %465 = vmatprep.mubr.bf16.mxu0 0
    %466 = vmatmul.mubr.bf16.gmra.mxu0 %v218
    %v467 = vpop.f32.mrf.mxu0
    %v468 = vadd.f32 %v130, %v467
    %v469 = vpop.f32.mrf.mxu0
    %v470 = vpop.f32.mrf.mxu0
    %v471 = vadd.f32 %v130, %v470
    %v472 = vpop.f32.mrf.mxu0
    %473 = vmatprep.mubr.bf16.mxu0 0
    %474 = vmatmul.mubr.bf16.gmra.mxu0 %v221
    %v475 = vpop.f32.mrf.mxu0
    %v476 = vadd.f32 %v130, %v475
    %v477 = vpop.f32.mrf.mxu0
    %v478 = vpop.f32.mrf.mxu0
    %v479 = vadd.f32 %v130, %v478
    %v480 = vpop.f32.mrf.mxu0
    %481 = vmatprep.mubr.bf16.mxu0 0
    %482 = vmatmul.mubr.bf16.gmra.mxu0 %v224
    %v483 = vpop.f32.mrf.mxu0
    %v484 = vadd.f32 %v130, %v483
    %v485 = vpop.f32.mrf.mxu0
    %v486 = vpop.f32.mrf.mxu0
    %v487 = vadd.f32 %v130, %v486
    %v488 = vpop.f32.mrf.mxu0
    %489 = vmatprep.mubr.bf16.mxu0 0
    %490 = vmatmul.mubr.bf16.gmra.mxu0 %v227
    %v491 = vpop.f32.mrf.mxu0
    %v492 = vadd.f32 %v130, %v491
    %v493 = vpop.f32.mrf.mxu0
    %v494 = vpop.f32.mrf.mxu0
    %v495 = vadd.f32 %v130, %v494
    %v496 = vpop.f32.mrf.mxu0
    %497 = vmatprep.mubr.bf16.mxu0 0
    %498 = vmatmul.mubr.bf16.gmra.mxu0 %v230
    %v499 = vpop.f32.mrf.mxu0
    %v500 = vadd.f32 %v130, %v499
    %v501 = vpop.f32.mrf.mxu0
    %v502 = vpop.f32.mrf.mxu0
    %v503 = vadd.f32 %v130, %v502
    %v504 = vpop.f32.mrf.mxu0
    %505 = vmatprep.mubr.bf16.mxu0 0
    %506 = vmatmul.mubr.bf16.gmra.mxu0 %v233
    %v507 = vpop.f32.mrf.mxu0
    %v508 = vadd.f32 %v130, %v507
    %v509 = vpop.f32.mrf.mxu0
    %v510 = vpop.f32.mrf.mxu0
    %v511 = vadd.f32 %v130, %v510
    %v512 = vpop.f32.mrf.mxu0
    %513 = vmatprep.mubr.bf16.mxu0 0
    %514 = vmatmul.mubr.bf16.gmra.mxu0 %v236
    %v515 = vpop.f32.mrf.mxu0
    %v516 = vadd.f32 %v130, %v515
    %v517 = vpop.f32.mrf.mxu0
    %v518 = vpop.f32.mrf.mxu0
    %v519 = vadd.f32 %v130, %v518
    %v520 = vpop.f32.mrf.mxu0
    %521 = vmatprep.mubr.bf16.mxu0 0
    %522 = vmatmul.mubr.bf16.gmra.mxu0 %v239
    %v523 = vpop.f32.mrf.mxu0
    %v524 = vadd.f32 %v130, %v523
    %v525 = vpop.f32.mrf.mxu0
    %v526 = vpop.f32.mrf.mxu0
    %v527 = vadd.f32 %v130, %v526
    %v528 = vpop.f32.mrf.mxu0
    %529 = vdwg.mxu0
    %v530 = vmul.f32 %v276, %v276
    %v531 = vmul.f32 %v279, %v279
    %v532 = vmul.f32 %v284, %v284
    %v533 = vmul.f32 %v287, %v287
    %v534 = vmul.f32 %v292, %v292
    %v535 = vmul.f32 %v295, %v295
    %v536 = vmul.f32 %v300, %v300
    %v537 = vmul.f32 %v303, %v303
    %v538 = vmul.f32 %v308, %v308
    %v539 = vmul.f32 %v311, %v311
    %v540 = vmul.f32 %v316, %v316
    %v541 = vmul.f32 %v319, %v319
    %v542 = vmul.f32 %v324, %v324
    %v543 = vmul.f32 %v327, %v327
    %v544 = vmul.f32 %v332, %v332
    %v545 = vmul.f32 %v335, %v335
    %v546 = vmul.f32 %v340, %v340
    %v547 = vmul.f32 %v343, %v343
    %v548 = vmul.f32 %v348, %v348
    %v549 = vmul.f32 %v351, %v351
    %v550 = vmul.f32 %v356, %v356
    %v551 = vmul.f32 %v359, %v359
    %v552 = vmul.f32 %v364, %v364
    %v553 = vmul.f32 %v367, %v367
    %v554 = vmul.f32 %v372, %v372
    %v555 = vmul.f32 %v375, %v375
    %v556 = vmul.f32 %v380, %v380
    %v557 = vmul.f32 %v383, %v383
    %v558 = vmul.f32 %v388, %v388
    %v559 = vmul.f32 %v391, %v391
    %v560 = vmul.f32 %v396, %v396
    %v561 = vmul.f32 %v399, %v399
    %v562 = vmul.f32 %v404, %v404
    %v563 = vmul.f32 %v407, %v407
    %v564 = vmul.f32 %v412, %v412
    %v565 = vmul.f32 %v415, %v415
    %v566 = vmul.f32 %v420, %v420
    %v567 = vmul.f32 %v423, %v423
    %v568 = vmul.f32 %v428, %v428
    %v569 = vmul.f32 %v431, %v431
    %v570 = vmul.f32 %v436, %v436
    %v571 = vmul.f32 %v439, %v439
    %v572 = vmul.f32 %v444, %v444
    %v573 = vmul.f32 %v447, %v447
    %v574 = vmul.f32 %v452, %v452
    %v575 = vmul.f32 %v455, %v455
    %v576 = vmul.f32 %v460, %v460
    %v577 = vmul.f32 %v463, %v463
    %v578 = vmul.f32 %v468, %v468
    %v579 = vmul.f32 %v471, %v471
    %v580 = vmul.f32 %v476, %v476
    %v581 = vmul.f32 %v479, %v479
    %v582 = vmul.f32 %v484, %v484
    %v583 = vmul.f32 %v487, %v487
    %v584 = vmul.f32 %v492, %v492
    %v585 = vmul.f32 %v495, %v495
    %v586 = vmul.f32 %v500, %v500
    %v587 = vmul.f32 %v503, %v503
    %v588 = vmul.f32 %v508, %v508
    %v589 = vmul.f32 %v511, %v511
    %v590 = vmul.f32 %v516, %v516
    %v591 = vmul.f32 %v519, %v519
    %v592 = vmul.f32 %v524, %v524
    %v593 = vmul.f32 %v527, %v527
    %594 = vadd.xlane.f32.xlu0 %v530
    %v595 = vpop.xlane.xlu0 %594
    %596 = vadd.xlane.f32.xlu0 %v531
    %v597 = vpop.xlane.xlu0 %596
    %598 = vadd.xlane.f32.xlu0 %v532
    %v599 = vpop.xlane.xlu0 %598
    %600 = vadd.xlane.f32.xlu0 %v533
    %v601 = vpop.xlane.xlu0 %600
    %602 = vadd.xlane.f32.xlu0 %v534
    %v603 = vpop.xlane.xlu0 %602
    %604 = vadd.xlane.f32.xlu0 %v535
    %v605 = vpop.xlane.xlu0 %604
    %606 = vadd.xlane.f32.xlu0 %v536
    %v607 = vpop.xlane.xlu0 %606
    %608 = vadd.xlane.f32.xlu0 %v537
    %v609 = vpop.xlane.xlu0 %608
    %610 = vadd.xlane.f32.xlu0 %v538
    %v611 = vpop.xlane.xlu0 %610
    %612 = vadd.xlane.f32.xlu0 %v539
    %v613 = vpop.xlane.xlu0 %612
    %614 = vadd.xlane.f32.xlu0 %v540
    %v615 = vpop.xlane.xlu0 %614
    %616 = vadd.xlane.f32.xlu0 %v541
    %v617 = vpop.xlane.xlu0 %616
    %618 = vadd.xlane.f32.xlu0 %v542
    %v619 = vpop.xlane.xlu0 %618
    %620 = vadd.xlane.f32.xlu0 %v543
    %v621 = vpop.xlane.xlu0 %620
    %622 = vadd.xlane.f32.xlu0 %v544
    %v623 = vpop.xlane.xlu0 %622
    %624 = vadd.xlane.f32.xlu0 %v545
    %v625 = vpop.xlane.xlu0 %624
    %626 = vadd.xlane.f32.xlu0 %v546
    %v627 = vpop.xlane.xlu0 %626
    %628 = vadd.xlane.f32.xlu0 %v547
    %v629 = vpop.xlane.xlu0 %628
    %630 = vadd.xlane.f32.xlu0 %v548
    %v631 = vpop.xlane.xlu0 %630
    %632 = vadd.xlane.f32.xlu0 %v549
    %v633 = vpop.xlane.xlu0 %632
    %634 = vadd.xlane.f32.xlu0 %v550
    %v635 = vpop.xlane.xlu0 %634
    %636 = vadd.xlane.f32.xlu0 %v551
    %v637 = vpop.xlane.xlu0 %636
    %638 = vadd.xlane.f32.xlu0 %v552
    %v639 = vpop.xlane.xlu0 %638
    %640 = vadd.xlane.f32.xlu0 %v553
    %v641 = vpop.xlane.xlu0 %640
    %642 = vadd.xlane.f32.xlu0 %v554
    %v643 = vpop.xlane.xlu0 %642
    %644 = vadd.xlane.f32.xlu0 %v555
    %v645 = vpop.xlane.xlu0 %644
    %646 = vadd.xlane.f32.xlu0 %v556
    %v647 = vpop.xlane.xlu0 %646
    %648 = vadd.xlane.f32.xlu0 %v557
    %v649 = vpop.xlane.xlu0 %648
    %650 = vadd.xlane.f32.xlu0 %v558
    %v651 = vpop.xlane.xlu0 %650
    %652 = vadd.xlane.f32.xlu0 %v559
    %v653 = vpop.xlane.xlu0 %652
    %654 = vadd.xlane.f32.xlu0 %v560
    %v655 = vpop.xlane.xlu0 %654
    %656 = vadd.xlane.f32.xlu0 %v561
    %v657 = vpop.xlane.xlu0 %656
    %658 = vadd.xlane.f32.xlu0 %v562
    %v659 = vpop.xlane.xlu0 %658
    %660 = vadd.xlane.f32.xlu0 %v563
    %v661 = vpop.xlane.xlu0 %660
    %662 = vadd.xlane.f32.xlu0 %v564
    %v663 = vpop.xlane.xlu0 %662
    %664 = vadd.xlane.f32.xlu0 %v565
    %v665 = vpop.xlane.xlu0 %664
    %666 = vadd.xlane.f32.xlu0 %v566
    %v667 = vpop.xlane.xlu0 %666
    %668 = vadd.xlane.f32.xlu0 %v567
    %v669 = vpop.xlane.xlu0 %668
    %670 = vadd.xlane.f32.xlu0 %v568
    %v671 = vpop.xlane.xlu0 %670
    %672 = vadd.xlane.f32.xlu0 %v569
    %v673 = vpop.xlane.xlu0 %672
    %674 = vadd.xlane.f32.xlu0 %v570
    %v675 = vpop.xlane.xlu0 %674
    %676 = vadd.xlane.f32.xlu0 %v571
    %v677 = vpop.xlane.xlu0 %676
    %678 = vadd.xlane.f32.xlu0 %v572
    %v679 = vpop.xlane.xlu0 %678
    %680 = vadd.xlane.f32.xlu0 %v573
    %v681 = vpop.xlane.xlu0 %680
    %682 = vadd.xlane.f32.xlu0 %v574
    %v683 = vpop.xlane.xlu0 %682
    %684 = vadd.xlane.f32.xlu0 %v575
    %v685 = vpop.xlane.xlu0 %684
    %686 = vadd.xlane.f32.xlu0 %v576
    %v687 = vpop.xlane.xlu0 %686
    %688 = vadd.xlane.f32.xlu0 %v577
    %v689 = vpop.xlane.xlu0 %688
    %690 = vadd.xlane.f32.xlu0 %v578
    %v691 = vpop.xlane.xlu0 %690
    %692 = vadd.xlane.f32.xlu0 %v579
    %v693 = vpop.xlane.xlu0 %692
    %694 = vadd.xlane.f32.xlu0 %v580
    %v695 = vpop.xlane.xlu0 %694
    %696 = vadd.xlane.f32.xlu0 %v581
    %v697 = vpop.xlane.xlu0 %696
    %698 = vadd.xlane.f32.xlu0 %v582
    %v699 = vpop.xlane.xlu0 %698
    %700 = vadd.xlane.f32.xlu0 %v583
    %v701 = vpop.xlane.xlu0 %700
    %702 = vadd.xlane.f32.xlu0 %v584
    %v703 = vpop.xlane.xlu0 %702
    %704 = vadd.xlane.f32.xlu0 %v585
    %v705 = vpop.xlane.xlu0 %704
    %706 = vadd.xlane.f32.xlu0 %v586
    %v707 = vpop.xlane.xlu0 %706
    %708 = vadd.xlane.f32.xlu0 %v587
    %v709 = vpop.xlane.xlu0 %708
    %710 = vadd.xlane.f32.xlu0 %v588
    %v711 = vpop.xlane.xlu0 %710
    %712 = vadd.xlane.f32.xlu0 %v589
    %v713 = vpop.xlane.xlu0 %712
    %714 = vadd.xlane.f32.xlu0 %v590
    %v715 = vpop.xlane.xlu0 %714
    %716 = vadd.xlane.f32.xlu0 %v591
    %v717 = vpop.xlane.xlu0 %716
    %718 = vadd.xlane.f32.xlu0 %v592
    %v719 = vpop.xlane.xlu0 %718
    %720 = vadd.xlane.f32.xlu0 %v593
    %v721 = vpop.xlane.xlu0 %720
    %v722 = vmax.f32 %v595, 1e-24
    %v723 = vmax.f32 %v597, 1e-24
    %v724 = vmax.f32 %v599, 1e-24
    %v725 = vmax.f32 %v601, 1e-24
    %v726 = vmax.f32 %v603, 1e-24
    %v727 = vmax.f32 %v605, 1e-24
    %v728 = vmax.f32 %v607, 1e-24
    %v729 = vmax.f32 %v609, 1e-24
    %v730 = vmax.f32 %v611, 1e-24
    %v731 = vmax.f32 %v613, 1e-24
    %v732 = vmax.f32 %v615, 1e-24
    %v733 = vmax.f32 %v617, 1e-24
    %v734 = vmax.f32 %v619, 1e-24
    %v735 = vmax.f32 %v621, 1e-24
    %v736 = vmax.f32 %v623, 1e-24
    %v737 = vmax.f32 %v625, 1e-24
    %v738 = vmax.f32 %v627, 1e-24
    %v739 = vmax.f32 %v629, 1e-24
    %v740 = vmax.f32 %v631, 1e-24
    %v741 = vmax.f32 %v633, 1e-24
    %v742 = vmax.f32 %v635, 1e-24
    %v743 = vmax.f32 %v637, 1e-24
    %v744 = vmax.f32 %v639, 1e-24
    %v745 = vmax.f32 %v641, 1e-24
    %v746 = vmax.f32 %v643, 1e-24
    %v747 = vmax.f32 %v645, 1e-24
    %v748 = vmax.f32 %v647, 1e-24
    %v749 = vmax.f32 %v649, 1e-24
    %v750 = vmax.f32 %v651, 1e-24
    %v751 = vmax.f32 %v653, 1e-24
    %v752 = vmax.f32 %v655, 1e-24
    %v753 = vmax.f32 %v657, 1e-24
    %v754 = vmax.f32 %v659, 1e-24
    %v755 = vmax.f32 %v661, 1e-24
    %v756 = vmax.f32 %v663, 1e-24
    %v757 = vmax.f32 %v665, 1e-24
    %v758 = vmax.f32 %v667, 1e-24
    %v759 = vmax.f32 %v669, 1e-24
    %v760 = vmax.f32 %v671, 1e-24
    %v761 = vmax.f32 %v673, 1e-24
    %v762 = vmax.f32 %v675, 1e-24
    %v763 = vmax.f32 %v677, 1e-24
    %v764 = vmax.f32 %v679, 1e-24
    %v765 = vmax.f32 %v681, 1e-24
    %v766 = vmax.f32 %v683, 1e-24
    %v767 = vmax.f32 %v685, 1e-24
    %v768 = vmax.f32 %v687, 1e-24
    %v769 = vmax.f32 %v689, 1e-24
    %v770 = vmax.f32 %v691, 1e-24
    %v771 = vmax.f32 %v693, 1e-24
    %v772 = vmax.f32 %v695, 1e-24
    %v773 = vmax.f32 %v697, 1e-24
    %v774 = vmax.f32 %v699, 1e-24
    %v775 = vmax.f32 %v701, 1e-24
    %v776 = vmax.f32 %v703, 1e-24
    %v777 = vmax.f32 %v705, 1e-24
    %v778 = vmax.f32 %v707, 1e-24
    %v779 = vmax.f32 %v709, 1e-24
    %v780 = vmax.f32 %v711, 1e-24
    %v781 = vmax.f32 %v713, 1e-24
    %v782 = vmax.f32 %v715, 1e-24
    %v783 = vmax.f32 %v717, 1e-24
    %v784 = vmax.f32 %v719, 1e-24
    %v785 = vmax.f32 %v721, 1e-24
    %v786 = vrsqrt.pop %v722
    %v787 = vrsqrt.pop %v723
    %v788 = vrsqrt.pop %v724
    %v789 = vrsqrt.pop %v725
    %v790 = vrsqrt.pop %v726
    %v791 = vrsqrt.pop %v727
    %v792 = vrsqrt.pop %v728
    %v793 = vrsqrt.pop %v729
    %v794 = vrsqrt.pop %v730
    %v795 = vrsqrt.pop %v731
    %v796 = vrsqrt.pop %v732
    %v797 = vrsqrt.pop %v733
    %v798 = vrsqrt.pop %v734
    %v799 = vrsqrt.pop %v735
    %v800 = vrsqrt.pop %v736
    %v801 = vrsqrt.pop %v737
    %v802 = vrsqrt.pop %v738
    %v803 = vrsqrt.pop %v739
    %v804 = vrsqrt.pop %v740
    %v805 = vrsqrt.pop %v741
    %v806 = vrsqrt.pop %v742
    %v807 = vrsqrt.pop %v743
    %v808 = vrsqrt.pop %v744
    %v809 = vrsqrt.pop %v745
    %v810 = vrsqrt.pop %v746
    %v811 = vrsqrt.pop %v747
    %v812 = vrsqrt.pop %v748
    %v813 = vrsqrt.pop %v749
    %v814 = vrsqrt.pop %v750
    %v815 = vrsqrt.pop %v751
    %v816 = vrsqrt.pop %v752
    %v817 = vrsqrt.pop %v753
    %v818 = vrsqrt.pop %v754
    %v819 = vrsqrt.pop %v755
    %v820 = vrsqrt.pop %v756
    %v821 = vrsqrt.pop %v757
    %v822 = vrsqrt.pop %v758
    %v823 = vrsqrt.pop %v759
    %v824 = vrsqrt.pop %v760
    %v825 = vrsqrt.pop %v761
    %v826 = vrsqrt.pop %v762
    %v827 = vrsqrt.pop %v763
    %v828 = vrsqrt.pop %v764
    %v829 = vrsqrt.pop %v765
    %v830 = vrsqrt.pop %v766
    %v831 = vrsqrt.pop %v767
    %v832 = vrsqrt.pop %v768
    %v833 = vrsqrt.pop %v769
    %v834 = vrsqrt.pop %v770
    %v835 = vrsqrt.pop %v771
    %v836 = vrsqrt.pop %v772
    %v837 = vrsqrt.pop %v773
    %v838 = vrsqrt.pop %v774
    %v839 = vrsqrt.pop %v775
    %v840 = vrsqrt.pop %v776
    %v841 = vrsqrt.pop %v777
    %v842 = vrsqrt.pop %v778
    %v843 = vrsqrt.pop %v779
    %v844 = vrsqrt.pop %v780
    %v845 = vrsqrt.pop %v781
    %v846 = vrsqrt.pop %v782
    %v847 = vrsqrt.pop %v783
    %v848 = vrsqrt.pop %v784
    %v849 = vrsqrt.pop %v785
    %v850 = vmul.f32 %v276, %v786
    %v851 = vmul.f32 %v279, %v787
    %v852 = vmul.f32 %v284, %v788
    %v853 = vmul.f32 %v287, %v789
    %v854 = vmul.f32 %v292, %v790
    %v855 = vmul.f32 %v295, %v791
    %v856 = vmul.f32 %v300, %v792
    %v857 = vmul.f32 %v303, %v793
    %v858 = vmul.f32 %v308, %v794
    %v859 = vmul.f32 %v311, %v795
    %v860 = vmul.f32 %v316, %v796
    %v861 = vmul.f32 %v319, %v797
    %v862 = vmul.f32 %v324, %v798
    %v863 = vmul.f32 %v327, %v799
    %v864 = vmul.f32 %v332, %v800
    %v865 = vmul.f32 %v335, %v801
    %v866 = vmul.f32 %v340, %v802
    %v867 = vmul.f32 %v343, %v803
    %v868 = vmul.f32 %v348, %v804
    %v869 = vmul.f32 %v351, %v805
    %v870 = vmul.f32 %v356, %v806
    %v871 = vmul.f32 %v359, %v807
    %v872 = vmul.f32 %v364, %v808
    %v873 = vmul.f32 %v367, %v809
    %v874 = vmul.f32 %v372, %v810
    %v875 = vmul.f32 %v375, %v811
    %v876 = vmul.f32 %v380, %v812
    %v877 = vmul.f32 %v383, %v813
    %v878 = vmul.f32 %v388, %v814
    %v879 = vmul.f32 %v391, %v815
    %v880 = vmul.f32 %v396, %v816
    %v881 = vmul.f32 %v399, %v817
    %v882 = vmul.f32 %v404, %v818
    %v883 = vmul.f32 %v407, %v819
    %v884 = vmul.f32 %v412, %v820
    %v885 = vmul.f32 %v415, %v821
    %v886 = vmul.f32 %v420, %v822
    %v887 = vmul.f32 %v423, %v823
    %v888 = vmul.f32 %v428, %v824
    %v889 = vmul.f32 %v431, %v825
    %v890 = vmul.f32 %v436, %v826
    %v891 = vmul.f32 %v439, %v827
    %v892 = vmul.f32 %v444, %v828
    %v893 = vmul.f32 %v447, %v829
    %v894 = vmul.f32 %v452, %v830
    %v895 = vmul.f32 %v455, %v831
    %v896 = vmul.f32 %v460, %v832
    %v897 = vmul.f32 %v463, %v833
    %v898 = vmul.f32 %v468, %v834
    %v899 = vmul.f32 %v471, %v835
    %v900 = vmul.f32 %v476, %v836
    %v901 = vmul.f32 %v479, %v837
    %v902 = vmul.f32 %v484, %v838
    %v903 = vmul.f32 %v487, %v839
    %v904 = vmul.f32 %v492, %v840
    %v905 = vmul.f32 %v495, %v841
    %v906 = vmul.f32 %v500, %v842
    %v907 = vmul.f32 %v503, %v843
    %v908 = vmul.f32 %v508, %v844
    %v909 = vmul.f32 %v511, %v845
    %v910 = vmul.f32 %v516, %v846
    %v911 = vmul.f32 %v519, %v847
    %v912 = vmul.f32 %v524, %v848
    %v913 = vmul.f32 %v527, %v849
    %914 = vst [vmem:[#allocation4] sm:$0xff] %v850
    %915 = vst [vmem:[#allocation4 + $0x8] sm:$0xff] %v851
    %916 = vst [vmem:[#allocation4 + $0x10] sm:$0xff] %v852
    %917 = vst [vmem:[#allocation4 + $0x18] sm:$0xff] %v853
    %918 = vst [vmem:[#allocation4 + $0x20] sm:$0xff] %v854
    %919 = vst [vmem:[#allocation4 + $0x28] sm:$0xff] %v855
    %920 = vst [vmem:[#allocation4 + $0x30] sm:$0xff] %v856
    %921 = vst [vmem:[#allocation4 + $0x38] sm:$0xff] %v857
    %922 = vst [vmem:[#allocation4 + $0x40] sm:$0xff] %v858
    %923 = vst [vmem:[#allocation4 + $0x48] sm:$0xff] %v859
    %924 = vst [vmem:[#allocation4 + $0x50] sm:$0xff] %v860
    %925 = vst [vmem:[#allocation4 + $0x58] sm:$0xff] %v861
    %926 = vst [vmem:[#allocation4 + $0x60] sm:$0xff] %v862
    %927 = vst [vmem:[#allocation4 + $0x68] sm:$0xff] %v863
    %928 = vst [vmem:[#allocation4 + $0x70] sm:$0xff] %v864
    %929 = vst [vmem:[#allocation4 + $0x78] sm:$0xff] %v865
    %930 = vst [vmem:[#allocation4 + $0x80] sm:$0xff] %v866
    %931 = vst [vmem:[#allocation4 + $0x88] sm:$0xff] %v867
    %932 = vst [vmem:[#allocation4 + $0x90] sm:$0xff] %v868
    %933 = vst [vmem:[#allocation4 + $0x98] sm:$0xff] %v869
    %934 = vst [vmem:[#allocation4 + $0xa0] sm:$0xff] %v870
    %935 = vst [vmem:[#allocation4 + $0xa8] sm:$0xff] %v871
    %936 = vst [vmem:[#allocation4 + $0xb0] sm:$0xff] %v872
    %937 = vst [vmem:[#allocation4 + $0xb8] sm:$0xff] %v873
    %938 = vst [vmem:[#allocation4 + $0xc0] sm:$0xff] %v874
    %939 = vst [vmem:[#allocation4 + $0xc8] sm:$0xff] %v875
    %940 = vst [vmem:[#allocation4 + $0xd0] sm:$0xff] %v876
    %941 = vst [vmem:[#allocation4 + $0xd8] sm:$0xff] %v877
    %942 = vst [vmem:[#allocation4 + $0xe0] sm:$0xff] %v878
    %943 = vst [vmem:[#allocation4 + $0xe8] sm:$0xff] %v879
    %944 = vst [vmem:[#allocation4 + $0xf0] sm:$0xff] %v880
    %945 = vst [vmem:[#allocation4 + $0xf8] sm:$0xff] %v881
    %946 = vst [vmem:[#allocation4 + $0x100] sm:$0xff] %v882
    %947 = vst [vmem:[#allocation4 + $0x108] sm:$0xff] %v883
    %948 = vst [vmem:[#allocation4 + $0x110] sm:$0xff] %v884
    %949 = vst [vmem:[#allocation4 + $0x118] sm:$0xff] %v885
    %950 = vst [vmem:[#allocation4 + $0x120] sm:$0xff] %v886
    %951 = vst [vmem:[#allocation4 + $0x128] sm:$0xff] %v887
    %952 = vst [vmem:[#allocation4 + $0x130] sm:$0xff] %v888
    %953 = vst [vmem:[#allocation4 + $0x138] sm:$0xff] %v889
    %954 = vst [vmem:[#allocation4 + $0x140] sm:$0xff] %v890
    %955 = vst [vmem:[#allocation4 + $0x148] sm:$0xff] %v891
    %956 = vst [vmem:[#allocation4 + $0x150] sm:$0xff] %v892
    %957 = vst [vmem:[#allocation4 + $0x158] sm:$0xff] %v893
    %958 = vst [vmem:[#allocation4 + $0x160] sm:$0xff] %v894
    %959 = vst [vmem:[#allocation4 + $0x168] sm:$0xff] %v895
    %960 = vst [vmem:[#allocation4 + $0x170] sm:$0xff] %v896
    %961 = vst [vmem:[#allocation4 + $0x178] sm:$0xff] %v897
    %962 = vst [vmem:[#allocation4 + $0x180] sm:$0xff] %v898
    %963 = vst [vmem:[#allocation4 + $0x188] sm:$0xff] %v899
    %964 = vst [vmem:[#allocation4 + $0x190] sm:$0xff] %v900
    %965 = vst [vmem:[#allocation4 + $0x198] sm:$0xff] %v901
    %966 = vst [vmem:[#allocation4 + $0x1a0] sm:$0xff] %v902
    %967 = vst [vmem:[#allocation4 + $0x1a8] sm:$0xff] %v903
    %968 = vst [vmem:[#allocation4 + $0x1b0] sm:$0xff] %v904
    %969 = vst [vmem:[#allocation4 + $0x1b8] sm:$0xff] %v905
    %970 = vst [vmem:[#allocation4 + $0x1c0] sm:$0xff] %v906
    %971 = vst [vmem:[#allocation4 + $0x1c8] sm:$0xff] %v907
    %972 = vst [vmem:[#allocation4 + $0x1d0] sm:$0xff] %v908
    %973 = vst [vmem:[#allocation4 + $0x1d8] sm:$0xff] %v909
    %974 = vst [vmem:[#allocation4 + $0x1e0] sm:$0xff] %v910
    %975 = vst [vmem:[#allocation4 + $0x1e8] sm:$0xff] %v911
    %976 = vst [vmem:[#allocation4 + $0x1f0] sm:$0xff] %v912
    %977 = vst [vmem:[#allocation4 + $0x1f8] sm:$0xff] %v913
    %v978 = vmax.f32 %v276, 0.0
    %v979 = vmax.f32 %v279, 0.0
    %v980 = vmax.f32 %v284, 0.0
    %v981 = vmax.f32 %v287, 0.0
    %v982 = vmax.f32 %v292, 0.0
    %v983 = vmax.f32 %v295, 0.0
    %v984 = vmax.f32 %v300, 0.0
    %v985 = vmax.f32 %v303, 0.0
    %v986 = vmax.f32 %v308, 0.0
    %v987 = vmax.f32 %v311, 0.0
    %v988 = vmax.f32 %v316, 0.0
    %v989 = vmax.f32 %v319, 0.0
    %v990 = vmax.f32 %v324, 0.0
    %v991 = vmax.f32 %v327, 0.0
    %v992 = vmax.f32 %v332, 0.0
    %v993 = vmax.f32 %v335, 0.0
    %v994 = vmax.f32 %v340, 0.0
    %v995 = vmax.f32 %v343, 0.0
    %v996 = vmax.f32 %v348, 0.0
    %v997 = vmax.f32 %v351, 0.0
    %v998 = vmax.f32 %v356, 0.0
    %v999 = vmax.f32 %v359, 0.0
    %v1000 = vmax.f32 %v364, 0.0
    %v1001 = vmax.f32 %v367, 0.0
    %v1002 = vmax.f32 %v372, 0.0
    %v1003 = vmax.f32 %v375, 0.0
    %v1004 = vmax.f32 %v380, 0.0
    %v1005 = vmax.f32 %v383, 0.0
    %v1006 = vmax.f32 %v388, 0.0
    %v1007 = vmax.f32 %v391, 0.0
    %v1008 = vmax.f32 %v396, 0.0
    %v1009 = vmax.f32 %v399, 0.0
    %v1010 = vmax.f32 %v404, 0.0
    %v1011 = vmax.f32 %v407, 0.0
    %v1012 = vmax.f32 %v412, 0.0
    %v1013 = vmax.f32 %v415, 0.0
    %v1014 = vmax.f32 %v420, 0.0
    %v1015 = vmax.f32 %v423, 0.0
    %v1016 = vmax.f32 %v428, 0.0
    %v1017 = vmax.f32 %v431, 0.0
    %v1018 = vmax.f32 %v436, 0.0
    %v1019 = vmax.f32 %v439, 0.0
    %v1020 = vmax.f32 %v444, 0.0
    %v1021 = vmax.f32 %v447, 0.0
    %v1022 = vmax.f32 %v452, 0.0
    %v1023 = vmax.f32 %v455, 0.0
    %v1024 = vmax.f32 %v460, 0.0
    %v1025 = vmax.f32 %v463, 0.0
    %v1026 = vmax.f32 %v468, 0.0
    %v1027 = vmax.f32 %v471, 0.0
    %v1028 = vmax.f32 %v476, 0.0
    %v1029 = vmax.f32 %v479, 0.0
    %v1030 = vmax.f32 %v484, 0.0
    %v1031 = vmax.f32 %v487, 0.0
    %v1032 = vmax.f32 %v492, 0.0
    %v1033 = vmax.f32 %v495, 0.0
    %v1034 = vmax.f32 %v500, 0.0
    %v1035 = vmax.f32 %v503, 0.0
    %v1036 = vmax.f32 %v508, 0.0
    %v1037 = vmax.f32 %v511, 0.0
    %v1038 = vmax.f32 %v516, 0.0
    %v1039 = vmax.f32 %v519, 0.0
    %v1040 = vmax.f32 %v524, 0.0
    %v1041 = vmax.f32 %v527, 0.0
    %v1042 = vpack.c.bf16 %v979, %v978
    %v1043 = vpack.c.bf16 %v981, %v980
    %v1044 = vpack.c.bf16 %v983, %v982
    %v1045 = vpack.c.bf16 %v985, %v984
    %v1046 = vpack.c.bf16 %v987, %v986
    %v1047 = vpack.c.bf16 %v989, %v988
    %v1048 = vpack.c.bf16 %v991, %v990
    %v1049 = vpack.c.bf16 %v993, %v992
    %v1050 = vpack.c.bf16 %v995, %v994
    %v1051 = vpack.c.bf16 %v997, %v996
    %v1052 = vpack.c.bf16 %v999, %v998
    %v1053 = vpack.c.bf16 %v1001, %v1000
    %v1054 = vpack.c.bf16 %v1003, %v1002
    %v1055 = vpack.c.bf16 %v1005, %v1004
    %v1056 = vpack.c.bf16 %v1007, %v1006
    %v1057 = vpack.c.bf16 %v1009, %v1008
    %v1058 = vpack.c.bf16 %v1011, %v1010
    %v1059 = vpack.c.bf16 %v1013, %v1012
    %v1060 = vpack.c.bf16 %v1015, %v1014
    %v1061 = vpack.c.bf16 %v1017, %v1016
    %v1062 = vpack.c.bf16 %v1019, %v1018
    %v1063 = vpack.c.bf16 %v1021, %v1020
    %v1064 = vpack.c.bf16 %v1023, %v1022
    %v1065 = vpack.c.bf16 %v1025, %v1024
    %v1066 = vpack.c.bf16 %v1027, %v1026
    %v1067 = vpack.c.bf16 %v1029, %v1028
    %v1068 = vpack.c.bf16 %v1031, %v1030
    %v1069 = vpack.c.bf16 %v1033, %v1032
    %v1070 = vpack.c.bf16 %v1035, %v1034
    %v1071 = vpack.c.bf16 %v1037, %v1036
    %v1072 = vpack.c.bf16 %v1039, %v1038
    %v1073 = vpack.c.bf16 %v1041, %v1040
    %v1074 = vld [vmem:[%s3] sm:$0xf]
    %v1075 = vld [vmem:[%s3 + $0x4] sm:$0xf]
    %v1076 = vld [vmem:[%s3 + $0x8] sm:$0xf]
    %v1077 = vld [vmem:[%s3 + $0xc] sm:$0xf]
    %v1078 = vld [vmem:[%s3 + $0x10] sm:$0xf]
    %v1079 = vld [vmem:[%s3 + $0x14] sm:$0xf]
    %v1080 = vld [vmem:[%s3 + $0x18] sm:$0xf]
    %v1081 = vld [vmem:[%s3 + $0x1c] sm:$0xf]
    %v1082 = vld [vmem:[%s3 + $0x20] sm:$0xf]
    %v1083 = vld [vmem:[%s3 + $0x24] sm:$0xf]
    %v1084 = vld [vmem:[%s3 + $0x28] sm:$0xf]
    %v1085 = vld [vmem:[%s3 + $0x2c] sm:$0xf]
    %v1086 = vld [vmem:[%s3 + $0x30] sm:$0xf]
    %v1087 = vld [vmem:[%s3 + $0x34] sm:$0xf]
    %v1088 = vld [vmem:[%s3 + $0x38] sm:$0xf]
    %v1089 = vld [vmem:[%s3 + $0x3c] sm:$0xf]
    %v1090 = vld [vmem:[%s4] sm:$0x1]
    %v1092 = vlaneseq
    %v1093 = vshrl.u32 %v1092, 7
    %v1094 = vsub.s32 0, %v1093
    %v1095 = vrot.slane %v1090, %v1094
    %v1113 = vunpack.c.l.b16 %v1074
    %v1114 = vunpack.c.l.b16 %v1075
    %v1115 = vunpack.c.l.b16 %v1076
    %v1116 = vunpack.c.l.b16 %v1077
    %v1117 = vunpack.c.l.b16 %v1078
    %v1118 = vunpack.c.l.b16 %v1079
    %v1119 = vunpack.c.l.b16 %v1080
    %v1120 = vunpack.c.l.b16 %v1081
    %v1121 = vunpack.c.l.b16 %v1082
    %v1122 = vunpack.c.l.b16 %v1083
    %v1123 = vunpack.c.l.b16 %v1084
    %v1124 = vunpack.c.l.b16 %v1085
    %v1125 = vunpack.c.l.b16 %v1086
    %v1126 = vunpack.c.l.b16 %v1087
    %v1127 = vunpack.c.l.b16 %v1088
    %v1128 = vunpack.c.l.b16 %v1089
    %v1129 = vpack.c.b16 %v1114, %v1113
    %v1130 = vpack.c.b16 %v1116, %v1115
    %v1131 = vpack.c.b16 %v1118, %v1117
    %v1132 = vpack.c.b16 %v1120, %v1119
    %v1133 = vpack.c.b16 %v1122, %v1121
    %v1134 = vpack.c.b16 %v1124, %v1123
    %v1135 = vpack.c.b16 %v1126, %v1125
    %v1136 = vpack.c.b16 %v1128, %v1127
    %1145 = vmatprep.subr.bf16.mxu0 0
    %1146 = vmatpush1.bf16.msra.mxu0 %v1136
    %1147 = vmatprep.subr.bf16.mxu0 0
    %1148 = vmatpush1.bf16.msra.mxu0 %v1135
    %1149 = vmatprep.subr.bf16.mxu0 0
    %1150 = vmatpush1.bf16.msra.mxu0 %v1134
    %1151 = vmatprep.subr.bf16.mxu0 0
    %1152 = vmatpush1.bf16.msra.mxu0 %v1133
    %1153 = vmatprep.subr.bf16.mxu0 0
    %1154 = vmatpush1.bf16.msra.mxu0 %v1132
    %1155 = vmatprep.subr.bf16.mxu0 0
    %1156 = vmatpush1.bf16.msra.mxu0 %v1131
    %1157 = vmatprep.subr.bf16.mxu0 0
    %1158 = vmatpush1.bf16.msra.mxu0 %v1130
    %1159 = vmatprep.subr.bf16.mxu0 0
    %1160 = vmatpush1.bf16.msra.mxu0 %v1129
    %1161 = vmatprep.subr.bf16.mxu0 0
    %1162 = vmatpush2.bf16.msra.mxu0 0
    %1163 = vmatprep.subr.bf16.mxu0 0
    %1164 = vmatpush2.bf16.msra.mxu0 0
    %1165 = vmatprep.subr.bf16.mxu0 0
    %1166 = vmatpush2.bf16.msra.mxu0 0
    %1167 = vmatprep.subr.bf16.mxu0 0
    %1168 = vmatpush2.bf16.msra.mxu0 0
    %1169 = vmatprep.subr.bf16.mxu0 0
    %1170 = vmatpush2.bf16.msra.mxu0 0
    %1171 = vmatprep.subr.bf16.mxu0 0
    %1172 = vmatpush2.bf16.msra.mxu0 0
    %1173 = vmatprep.subr.bf16.mxu0 0
    %1174 = vmatpush2.bf16.msra.mxu0 0
    %1175 = vmatprep.subr.bf16.mxu0 0
    %1176 = vmatpush2.bf16.msra.mxu0 0
    %1177 = vmatprep.mubr.bf16.mxu0 0
    %1178 = vmatmul.mubr.bf16.gmra.mxu0 %v1042
    %v1179 = vpop.f32.mrf.mxu0
    %v1180 = vadd.f32 %v1095, %v1179
    %v1181 = vpop.f32.mrf.mxu0
    %v1182 = vpop.f32.mrf.mxu0
    %v1183 = vadd.f32 %v1095, %v1182
    %v1184 = vpop.f32.mrf.mxu0
    %1185 = vmatprep.mubr.bf16.mxu0 0
    %1186 = vmatmul.mubr.bf16.gmra.mxu0 %v1043
    %v1187 = vpop.f32.mrf.mxu0
    %v1188 = vadd.f32 %v1095, %v1187
    %v1189 = vpop.f32.mrf.mxu0
    %v1190 = vpop.f32.mrf.mxu0
    %v1191 = vadd.f32 %v1095, %v1190
    %v1192 = vpop.f32.mrf.mxu0
    %1193 = vmatprep.mubr.bf16.mxu0 0
    %1194 = vmatmul.mubr.bf16.gmra.mxu0 %v1044
    %v1195 = vpop.f32.mrf.mxu0
    %v1196 = vadd.f32 %v1095, %v1195
    %v1197 = vpop.f32.mrf.mxu0
    %v1198 = vpop.f32.mrf.mxu0
    %v1199 = vadd.f32 %v1095, %v1198
    %v1200 = vpop.f32.mrf.mxu0
    %1201 = vmatprep.mubr.bf16.mxu0 0
    %1202 = vmatmul.mubr.bf16.gmra.mxu0 %v1045
    %v1203 = vpop.f32.mrf.mxu0
    %v1204 = vadd.f32 %v1095, %v1203
    %v1205 = vpop.f32.mrf.mxu0
    %v1206 = vpop.f32.mrf.mxu0
    %v1207 = vadd.f32 %v1095, %v1206
    %v1208 = vpop.f32.mrf.mxu0
    %1209 = vmatprep.mubr.bf16.mxu0 0
    %1210 = vmatmul.mubr.bf16.gmra.mxu0 %v1046
    %v1211 = vpop.f32.mrf.mxu0
    %v1212 = vadd.f32 %v1095, %v1211
    %v1213 = vpop.f32.mrf.mxu0
    %v1214 = vpop.f32.mrf.mxu0
    %v1215 = vadd.f32 %v1095, %v1214
    %v1216 = vpop.f32.mrf.mxu0
    %1217 = vmatprep.mubr.bf16.mxu0 0
    %1218 = vmatmul.mubr.bf16.gmra.mxu0 %v1047
    %v1219 = vpop.f32.mrf.mxu0
    %v1220 = vadd.f32 %v1095, %v1219
    %v1221 = vpop.f32.mrf.mxu0
    %v1222 = vpop.f32.mrf.mxu0
    %v1223 = vadd.f32 %v1095, %v1222
    %v1224 = vpop.f32.mrf.mxu0
    %1225 = vmatprep.mubr.bf16.mxu0 0
    %1226 = vmatmul.mubr.bf16.gmra.mxu0 %v1048
    %v1227 = vpop.f32.mrf.mxu0
    %v1228 = vadd.f32 %v1095, %v1227
    %v1229 = vpop.f32.mrf.mxu0
    %v1230 = vpop.f32.mrf.mxu0
    %v1231 = vadd.f32 %v1095, %v1230
    %v1232 = vpop.f32.mrf.mxu0
    %1233 = vmatprep.mubr.bf16.mxu0 0
    %1234 = vmatmul.mubr.bf16.gmra.mxu0 %v1049
    %v1235 = vpop.f32.mrf.mxu0
    %v1236 = vadd.f32 %v1095, %v1235
    %v1237 = vpop.f32.mrf.mxu0
    %v1238 = vpop.f32.mrf.mxu0
    %v1239 = vadd.f32 %v1095, %v1238
    %v1240 = vpop.f32.mrf.mxu0
    %1241 = vmatprep.mubr.bf16.mxu0 0
    %1242 = vmatmul.mubr.bf16.gmra.mxu0 %v1050
    %v1243 = vpop.f32.mrf.mxu0
    %v1244 = vadd.f32 %v1095, %v1243
    %v1245 = vpop.f32.mrf.mxu0
    %v1246 = vpop.f32.mrf.mxu0
    %v1247 = vadd.f32 %v1095, %v1246
    %v1248 = vpop.f32.mrf.mxu0
    %1249 = vmatprep.mubr.bf16.mxu0 0
    %1250 = vmatmul.mubr.bf16.gmra.mxu0 %v1051
    %v1251 = vpop.f32.mrf.mxu0
    %v1252 = vadd.f32 %v1095, %v1251
    %v1253 = vpop.f32.mrf.mxu0
    %v1254 = vpop.f32.mrf.mxu0
    %v1255 = vadd.f32 %v1095, %v1254
    %v1256 = vpop.f32.mrf.mxu0
    %1257 = vmatprep.mubr.bf16.mxu0 0
    %1258 = vmatmul.mubr.bf16.gmra.mxu0 %v1052
    %v1259 = vpop.f32.mrf.mxu0
    %v1260 = vadd.f32 %v1095, %v1259
    %v1261 = vpop.f32.mrf.mxu0
    %v1262 = vpop.f32.mrf.mxu0
    %v1263 = vadd.f32 %v1095, %v1262
    %v1264 = vpop.f32.mrf.mxu0
    %1265 = vmatprep.mubr.bf16.mxu0 0
    %1266 = vmatmul.mubr.bf16.gmra.mxu0 %v1053
    %v1267 = vpop.f32.mrf.mxu0
    %v1268 = vadd.f32 %v1095, %v1267
    %v1269 = vpop.f32.mrf.mxu0
    %v1270 = vpop.f32.mrf.mxu0
    %v1271 = vadd.f32 %v1095, %v1270
    %v1272 = vpop.f32.mrf.mxu0
    %1273 = vmatprep.mubr.bf16.mxu0 0
    %1274 = vmatmul.mubr.bf16.gmra.mxu0 %v1054
    %v1275 = vpop.f32.mrf.mxu0
    %v1276 = vadd.f32 %v1095, %v1275
    %v1277 = vpop.f32.mrf.mxu0
    %v1278 = vpop.f32.mrf.mxu0
    %v1279 = vadd.f32 %v1095, %v1278
    %v1280 = vpop.f32.mrf.mxu0
    %1281 = vmatprep.mubr.bf16.mxu0 0
    %1282 = vmatmul.mubr.bf16.gmra.mxu0 %v1055
    %v1283 = vpop.f32.mrf.mxu0
    %v1284 = vadd.f32 %v1095, %v1283
    %v1285 = vpop.f32.mrf.mxu0
    %v1286 = vpop.f32.mrf.mxu0
    %v1287 = vadd.f32 %v1095, %v1286
    %v1288 = vpop.f32.mrf.mxu0
    %1289 = vmatprep.mubr.bf16.mxu0 0
    %1290 = vmatmul.mubr.bf16.gmra.mxu0 %v1056
    %v1291 = vpop.f32.mrf.mxu0
    %v1292 = vadd.f32 %v1095, %v1291
    %v1293 = vpop.f32.mrf.mxu0
    %v1294 = vpop.f32.mrf.mxu0
    %v1295 = vadd.f32 %v1095, %v1294
    %v1296 = vpop.f32.mrf.mxu0
    %1297 = vmatprep.mubr.bf16.mxu0 0
    %1298 = vmatmul.mubr.bf16.gmra.mxu0 %v1057
    %v1299 = vpop.f32.mrf.mxu0
    %v1300 = vadd.f32 %v1095, %v1299
    %v1301 = vpop.f32.mrf.mxu0
    %v1302 = vpop.f32.mrf.mxu0
    %v1303 = vadd.f32 %v1095, %v1302
    %v1304 = vpop.f32.mrf.mxu0
    %1305 = vmatprep.mubr.bf16.mxu0 0
    %1306 = vmatmul.mubr.bf16.gmra.mxu0 %v1058
    %v1307 = vpop.f32.mrf.mxu0
    %v1308 = vadd.f32 %v1095, %v1307
    %v1309 = vpop.f32.mrf.mxu0
    %v1310 = vpop.f32.mrf.mxu0
    %v1311 = vadd.f32 %v1095, %v1310
    %v1312 = vpop.f32.mrf.mxu0
    %1313 = vmatprep.mubr.bf16.mxu0 0
    %1314 = vmatmul.mubr.bf16.gmra.mxu0 %v1059
    %v1315 = vpop.f32.mrf.mxu0
    %v1316 = vadd.f32 %v1095, %v1315
    %v1317 = vpop.f32.mrf.mxu0
    %v1318 = vpop.f32.mrf.mxu0
    %v1319 = vadd.f32 %v1095, %v1318
    %v1320 = vpop.f32.mrf.mxu0
    %1321 = vmatprep.mubr.bf16.mxu0 0
    %1322 = vmatmul.mubr.bf16.gmra.mxu0 %v1060
    %v1323 = vpop.f32.mrf.mxu0
    %v1324 = vadd.f32 %v1095, %v1323
    %v1325 = vpop.f32.mrf.mxu0
    %v1326 = vpop.f32.mrf.mxu0
    %v1327 = vadd.f32 %v1095, %v1326
    %v1328 = vpop.f32.mrf.mxu0
    %1329 = vmatprep.mubr.bf16.mxu0 0
    %1330 = vmatmul.mubr.bf16.gmra.mxu0 %v1061
    %v1331 = vpop.f32.mrf.mxu0
    %v1332 = vadd.f32 %v1095, %v1331
    %v1333 = vpop.f32.mrf.mxu0
    %v1334 = vpop.f32.mrf.mxu0
    %v1335 = vadd.f32 %v1095, %v1334
    %v1336 = vpop.f32.mrf.mxu0
    %1337 = vmatprep.mubr.bf16.mxu0 0
    %1338 = vmatmul.mubr.bf16.gmra.mxu0 %v1062
    %v1339 = vpop.f32.mrf.mxu0
    %v1340 = vadd.f32 %v1095, %v1339
    %v1341 = vpop.f32.mrf.mxu0
    %v1342 = vpop.f32.mrf.mxu0
    %v1343 = vadd.f32 %v1095, %v1342
    %v1344 = vpop.f32.mrf.mxu0
    %1345 = vmatprep.mubr.bf16.mxu0 0
    %1346 = vmatmul.mubr.bf16.gmra.mxu0 %v1063
    %v1347 = vpop.f32.mrf.mxu0
    %v1348 = vadd.f32 %v1095, %v1347
    %v1349 = vpop.f32.mrf.mxu0
    %v1350 = vpop.f32.mrf.mxu0
    %v1351 = vadd.f32 %v1095, %v1350
    %v1352 = vpop.f32.mrf.mxu0
    %1353 = vmatprep.mubr.bf16.mxu0 0
    %1354 = vmatmul.mubr.bf16.gmra.mxu0 %v1064
    %v1355 = vpop.f32.mrf.mxu0
    %v1356 = vadd.f32 %v1095, %v1355
    %v1357 = vpop.f32.mrf.mxu0
    %v1358 = vpop.f32.mrf.mxu0
    %v1359 = vadd.f32 %v1095, %v1358
    %v1360 = vpop.f32.mrf.mxu0
    %1361 = vmatprep.mubr.bf16.mxu0 0
    %1362 = vmatmul.mubr.bf16.gmra.mxu0 %v1065
    %v1363 = vpop.f32.mrf.mxu0
    %v1364 = vadd.f32 %v1095, %v1363
    %v1365 = vpop.f32.mrf.mxu0
    %v1366 = vpop.f32.mrf.mxu0
    %v1367 = vadd.f32 %v1095, %v1366
    %v1368 = vpop.f32.mrf.mxu0
    %1369 = vmatprep.mubr.bf16.mxu0 0
    %1370 = vmatmul.mubr.bf16.gmra.mxu0 %v1066
    %v1371 = vpop.f32.mrf.mxu0
    %v1372 = vadd.f32 %v1095, %v1371
    %v1373 = vpop.f32.mrf.mxu0
    %v1374 = vpop.f32.mrf.mxu0
    %v1375 = vadd.f32 %v1095, %v1374
    %v1376 = vpop.f32.mrf.mxu0
    %1377 = vmatprep.mubr.bf16.mxu0 0
    %1378 = vmatmul.mubr.bf16.gmra.mxu0 %v1067
    %v1379 = vpop.f32.mrf.mxu0
    %v1380 = vadd.f32 %v1095, %v1379
    %v1381 = vpop.f32.mrf.mxu0
    %v1382 = vpop.f32.mrf.mxu0
    %v1383 = vadd.f32 %v1095, %v1382
    %v1384 = vpop.f32.mrf.mxu0
    %1385 = vmatprep.mubr.bf16.mxu0 0
    %1386 = vmatmul.mubr.bf16.gmra.mxu0 %v1068
    %v1387 = vpop.f32.mrf.mxu0
    %v1388 = vadd.f32 %v1095, %v1387
    %v1389 = vpop.f32.mrf.mxu0
    %v1390 = vpop.f32.mrf.mxu0
    %v1391 = vadd.f32 %v1095, %v1390
    %v1392 = vpop.f32.mrf.mxu0
    %1393 = vmatprep.mubr.bf16.mxu0 0
    %1394 = vmatmul.mubr.bf16.gmra.mxu0 %v1069
    %v1395 = vpop.f32.mrf.mxu0
    %v1396 = vadd.f32 %v1095, %v1395
    %v1397 = vpop.f32.mrf.mxu0
    %v1398 = vpop.f32.mrf.mxu0
    %v1399 = vadd.f32 %v1095, %v1398
    %v1400 = vpop.f32.mrf.mxu0
    %1401 = vmatprep.mubr.bf16.mxu0 0
    %1402 = vmatmul.mubr.bf16.gmra.mxu0 %v1070
    %v1403 = vpop.f32.mrf.mxu0
    %v1404 = vadd.f32 %v1095, %v1403
    %v1405 = vpop.f32.mrf.mxu0
    %v1406 = vpop.f32.mrf.mxu0
    %v1407 = vadd.f32 %v1095, %v1406
    %v1408 = vpop.f32.mrf.mxu0
    %1409 = vmatprep.mubr.bf16.mxu0 0
    %1410 = vmatmul.mubr.bf16.gmra.mxu0 %v1071
    %v1411 = vpop.f32.mrf.mxu0
    %v1412 = vadd.f32 %v1095, %v1411
    %v1413 = vpop.f32.mrf.mxu0
    %v1414 = vpop.f32.mrf.mxu0
    %v1415 = vadd.f32 %v1095, %v1414
    %v1416 = vpop.f32.mrf.mxu0
    %1417 = vmatprep.mubr.bf16.mxu0 0
    %1418 = vmatmul.mubr.bf16.gmra.mxu0 %v1072
    %v1419 = vpop.f32.mrf.mxu0
    %v1420 = vadd.f32 %v1095, %v1419
    %v1421 = vpop.f32.mrf.mxu0
    %v1422 = vpop.f32.mrf.mxu0
    %v1423 = vadd.f32 %v1095, %v1422
    %v1424 = vpop.f32.mrf.mxu0
    %1425 = vmatprep.mubr.bf16.mxu0 0
    %1426 = vmatmul.mubr.bf16.gmra.mxu0 %v1073
    %v1427 = vpop.f32.mrf.mxu0
    %v1428 = vadd.f32 %v1095, %v1427
    %v1429 = vpop.f32.mrf.mxu0
    %v1430 = vpop.f32.mrf.mxu0
    %v1431 = vadd.f32 %v1095, %v1430
    %v1432 = vpop.f32.mrf.mxu0
    %1433 = vdwg.mxu0
    %1434 = vst [vmem:[#allocation2] sm:$0xff] %v1180
    %1435 = vst [vmem:[#allocation2 + $0x8] sm:$0xff] %v1183
    %1436 = vst [vmem:[#allocation2 + $0x10] sm:$0xff] %v1188
    %1437 = vst [vmem:[#allocation2 + $0x18] sm:$0xff] %v1191
    %1438 = vst [vmem:[#allocation2 + $0x20] sm:$0xff] %v1196
    %1439 = vst [vmem:[#allocation2 + $0x28] sm:$0xff] %v1199
    %1440 = vst [vmem:[#allocation2 + $0x30] sm:$0xff] %v1204
    %1441 = vst [vmem:[#allocation2 + $0x38] sm:$0xff] %v1207
    %1442 = vst [vmem:[#allocation2 + $0x40] sm:$0xff] %v1212
    %1443 = vst [vmem:[#allocation2 + $0x48] sm:$0xff] %v1215
    %1444 = vst [vmem:[#allocation2 + $0x50] sm:$0xff] %v1220
    %1445 = vst [vmem:[#allocation2 + $0x58] sm:$0xff] %v1223
    %1446 = vst [vmem:[#allocation2 + $0x60] sm:$0xff] %v1228
    %1447 = vst [vmem:[#allocation2 + $0x68] sm:$0xff] %v1231
    %1448 = vst [vmem:[#allocation2 + $0x70] sm:$0xff] %v1236
    %1449 = vst [vmem:[#allocation2 + $0x78] sm:$0xff] %v1239
    %1450 = vst [vmem:[#allocation2 + $0x80] sm:$0xff] %v1244
    %1451 = vst [vmem:[#allocation2 + $0x88] sm:$0xff] %v1247
    %1452 = vst [vmem:[#allocation2 + $0x90] sm:$0xff] %v1252
    %1453 = vst [vmem:[#allocation2 + $0x98] sm:$0xff] %v1255
    %1454 = vst [vmem:[#allocation2 + $0xa0] sm:$0xff] %v1260
    %1455 = vst [vmem:[#allocation2 + $0xa8] sm:$0xff] %v1263
    %1456 = vst [vmem:[#allocation2 + $0xb0] sm:$0xff] %v1268
    %1457 = vst [vmem:[#allocation2 + $0xb8] sm:$0xff] %v1271
    %1458 = vst [vmem:[#allocation2 + $0xc0] sm:$0xff] %v1276
    %1459 = vst [vmem:[#allocation2 + $0xc8] sm:$0xff] %v1279
    %1460 = vst [vmem:[#allocation2 + $0xd0] sm:$0xff] %v1284
    %1461 = vst [vmem:[#allocation2 + $0xd8] sm:$0xff] %v1287
    %1462 = vst [vmem:[#allocation2 + $0xe0] sm:$0xff] %v1292
    %1463 = vst [vmem:[#allocation2 + $0xe8] sm:$0xff] %v1295
    %1464 = vst [vmem:[#allocation2 + $0xf0] sm:$0xff] %v1300
    %1465 = vst [vmem:[#allocation2 + $0xf8] sm:$0xff] %v1303
    %1466 = vst [vmem:[#allocation2 + $0x100] sm:$0xff] %v1308
    %1467 = vst [vmem:[#allocation2 + $0x108] sm:$0xff] %v1311
    %1468 = vst [vmem:[#allocation2 + $0x110] sm:$0xff] %v1316
    %1469 = vst [vmem:[#allocation2 + $0x118] sm:$0xff] %v1319
    %1470 = vst [vmem:[#allocation2 + $0x120] sm:$0xff] %v1324
    %1471 = vst [vmem:[#allocation2 + $0x128] sm:$0xff] %v1327
    %1472 = vst [vmem:[#allocation2 + $0x130] sm:$0xff] %v1332
    %1473 = vst [vmem:[#allocation2 + $0x138] sm:$0xff] %v1335
    %1474 = vst [vmem:[#allocation2 + $0x140] sm:$0xff] %v1340
    %1475 = vst [vmem:[#allocation2 + $0x148] sm:$0xff] %v1343
    %1476 = vst [vmem:[#allocation2 + $0x150] sm:$0xff] %v1348
    %1477 = vst [vmem:[#allocation2 + $0x158] sm:$0xff] %v1351
    %1478 = vst [vmem:[#allocation2 + $0x160] sm:$0xff] %v1356
    %1479 = vst [vmem:[#allocation2 + $0x168] sm:$0xff] %v1359
    %1480 = vst [vmem:[#allocation2 + $0x170] sm:$0xff] %v1364
    %1481 = vst [vmem:[#allocation2 + $0x178] sm:$0xff] %v1367
    %1482 = vst [vmem:[#allocation2 + $0x180] sm:$0xff] %v1372
    %1483 = vst [vmem:[#allocation2 + $0x188] sm:$0xff] %v1375
    %1484 = vst [vmem:[#allocation2 + $0x190] sm:$0xff] %v1380
    %1485 = vst [vmem:[#allocation2 + $0x198] sm:$0xff] %v1383
    %1486 = vst [vmem:[#allocation2 + $0x1a0] sm:$0xff] %v1388
    %1487 = vst [vmem:[#allocation2 + $0x1a8] sm:$0xff] %v1391
    %1488 = vst [vmem:[#allocation2 + $0x1b0] sm:$0xff] %v1396
    %1489 = vst [vmem:[#allocation2 + $0x1b8] sm:$0xff] %v1399
    %1490 = vst [vmem:[#allocation2 + $0x1c0] sm:$0xff] %v1404
    %1491 = vst [vmem:[#allocation2 + $0x1c8] sm:$0xff] %v1407
    %1492 = vst [vmem:[#allocation2 + $0x1d0] sm:$0xff] %v1412
    %1493 = vst [vmem:[#allocation2 + $0x1d8] sm:$0xff] %v1415
    %1494 = vst [vmem:[#allocation2 + $0x1e0] sm:$0xff] %v1420
    %1495 = vst [vmem:[#allocation2 + $0x1e8] sm:$0xff] %v1423
    %1496 = vst [vmem:[#allocation2 + $0x1f0] sm:$0xff] %v1428
    %1497 = vst [vmem:[#allocation2 + $0x1f8] sm:$0xff] %v1431
    // Predicated region
    $region22: #{tpu_custom_call.1} parent=1 // pred_check
      _
    $region23: #{tpu_custom_call.1} parent=1 // pred_check_branch
      %1499 = sbr.rel (0) target = $region25
    $region24: #{tpu_custom_call.1} parent=1 // pred_region
      %s1501 = ssub.s32 8192, 8192
      %1502 = vsyncadd [#allocation3], %s1501
      %s1503 = sshll.u32 [#allocation2], 4
      %s1504 = int_to_ptr.vmem [resolvable:$true] %s1503
      %1509 = dma.vmem_to_hbm [thread:$0]  %s1504, 8192, %s5, [#allocation3], 128, 128, 8
    $region25: #{tpu_custom_call.1} parent=1 // pred_fallthru
      _
    // Predicated region
    $region26: #{tpu_custom_call.1} parent=1 // pred_check
      _
    $region27: #{tpu_custom_call.1} parent=1 // pred_check_branch
      %1511 = sbr.rel (0) target = $region29
    $region28: #{tpu_custom_call.1} parent=1 // pred_region
      %s1513 = ssub.s32 8192, 8192
      %1514 = vsyncadd [#allocation5], %s1513
      %s1515 = sshll.u32 [#allocation4], 4
      %s1516 = int_to_ptr.vmem [resolvable:$true] %s1515
      %1521 = dma.vmem_to_hbm [thread:$0]  %s1516, 8192, %s6, [#allocation5], 128, 128, 8
    $region29: #{tpu_custom_call.1} parent=1 // pred_fallthru
      _
    // Predicated region
    $region30: #{tpu_custom_call.1} parent=1 // pred_check
      _
    $region31: #{tpu_custom_call.1} parent=1 // pred_check_branch
      %1523 = sbr.rel (0) target = $region33
    $region32: #{tpu_custom_call.1} parent=1 // pred_region
      %1524 = dma.done [#allocation3], 8192
    $region33: #{tpu_custom_call.1} parent=1 // pred_fallthru
      _
    // Predicated region
    $region34: #{tpu_custom_call.1} parent=1 // pred_check
      _
    $region35: #{tpu_custom_call.1} parent=1 // pred_check_branch
      %1526 = sbr.rel (0) target = $region37
    $region36: #{tpu_custom_call.1} parent=1 // pred_region
      %1527 = dma.done [#allocation5], 8192
    $region37: #{tpu_custom_call.1} parent=1 // pred_fallthru
      _
    %1528 = vsyncpa [#allocation3], 1
    %1529 = vsyncpa [#allocation5], 1

</llo_original>
